<compile_context>
chip_gen: v5e
topology: v5e:2x2
jax: 0.10.0
libtpu: 0.0.40
codegen_flags: <defaults>
</compile_context>

<pallas_src>
import functools

import jax
import jax.numpy as jnp
from jax.experimental import pallas as pl
from jax.experimental.pallas import tpu as pltpu


# ---------------------------------------------------------------------------
# Kernel 1: fused (upsample o conv o +bias) on the low-res image (phase
# decomposed) + per-block BatchNorm partial statistics.
# ---------------------------------------------------------------------------
def conv_phase_stats_kernel(x_ref, w_ref, b_ref, y_ref, s1_ref, s2_ref, xp_ref,
                            *, h, w, sf, cout, pad_lo, starts):
    """
    x_ref : (BT, h, w, Cin)  f32    unpadded LOW-RES NHWC tile
    w_ref : (noff^2*Cin, sf^2*Cout) bf16 phase-effective weights, cols = (py, px, c)
    b_ref : (1, sf^2*Cout)   f32    conv bias tiled over phases
    y_ref : (BT*h, sf*Wo*Cout) bf16 conv+bias output (row-major == NHWC)
    s1/s2 : (1, 1, sf^2*Cout) f32   per-grid-block partial sum / sum-of-squares
    xp_ref: (BT, h+pl+ph, w+pl+ph, Cin) bf16 VMEM scratch (zero-padded tile)
    """
    bt = x_ref.shape[0]
    cin = x_ref.shape[-1]
    noff = len(starts)
    pc = sf * cout                 # columns of one row-phase slab: (px, c)
    wpc = w * pc                   # lane-dense width of one stored row-phase slab

    # Zero-pad the low-res tile in VMEM (no HBM pad copy in the wrapper).
    xp_ref[...] = jnp.zeros_like(xp_ref)
    xp_ref[:, pad_lo:pad_lo + h, pad_lo:pad_lo + w, :] = (
        x_ref[...].astype(xp_ref.dtype))

    # im2col over the (<= 3x3) low-res offsets -> (BT*h*w, noff^2*Cin), bf16 for MXU.
    cols = [xp_ref[:, ay:ay + h, ax:ax + w, :] for ay in starts for ax in starts]
    patches = jnp.concatenate(cols, axis=-1).reshape(bt * h * w, noff * noff * cin)

    # Single MXU matmul: all (row, col) output phases folded into N = sf^2*Cout.
    o = jnp.dot(patches, w_ref[...], preferred_element_type=jnp.float32)
    o = o + b_ref[...]

    # BatchNorm partial statistics (f32, before the bf16 cast of y).
    s1_ref[0] = jnp.sum(o, axis=0, keepdims=True)
    s2_ref[0] = jnp.sum(o * o, axis=0, keepdims=True)

    # Lane-dense stores: one contiguous, 128-lane slab per output row-phase.
    # dense[r, j*pc:(j+1)*pc] = o[(r, x=j), (px, c)]  ==  NHWC row-major.
    for py in range(sf):
        op = o[:, py * pc:(py + 1) * pc].astype(y_ref.dtype)   # (BT*h*w, pc)
        o3 = op.reshape(bt * h, w, pc)                         # split major dim only
        dense = jnp.concatenate([o3[:, j, :] for j in range(w)], axis=-1)
        y_ref[:, py * wpc:(py + 1) * wpc] = dense


# ---------------------------------------------------------------------------
# Kernel 2: BatchNorm apply (hoisted scale/shift) + ReLU + NHWC -> NCHW store.
# ---------------------------------------------------------------------------
def bn_relu_nchw_kernel(y_ref, scale_ref, shift_ref, o_ref):
    """y_ref: (1, TH*Wo, C) bf16;  scale/shift: (1, C) f32;  o_ref: (1, C, TH*Wo) f32."""
    y = y_ref[0].astype(jnp.float32)                           # (TH*Wo, C)
    z = jnp.maximum(y * scale_ref[...] + shift_ref[...], 0.0)
    o_ref[0] = z.T.astype(o_ref.dtype)                         # (C, TH*Wo)


# ---------------------------------------------------------------------------
# Wrapper helpers
# ---------------------------------------------------------------------------
def _phase_weights(conv_w, sf, kernel_size):
    """Fold nearest-neighbor upsample + conv into low-res effective weights.

    conv_w: (k, k, Cin, Cout) HWIO.  Returns (w_mat, starts, pad_lo, pad_hi) with
    w_mat[(ay*noff+ax)*Cin + ci, (py*sf+px)*Cout + co] = sum of original taps (dy,dx)
    whose upsampled read maps to low-res offset (ay, ax) for output phase (py, px).
    """
    k = kernel_size
    pad = 1 if k == 3 else 0
    cin, cout = conv_w.shape[2], conv_w.shape[3]
    offs = sorted({(p + d - pad) // sf for p in range(sf) for d in range(k)})
    idx = {o: a for a, o in enumerate(offs)}
    noff = len(offs)
    pad_lo, pad_hi = -offs[0], offs[-1]

    w_eff = jnp.zeros((sf, sf, noff, noff, cin, cout), conv_w.dtype)
    for py in range(sf):
        for dy in range(k):
            ay = idx[(py + dy - pad) // sf]
            for px in range(sf):
                for dx in range(k):
                    ax = idx[(px + dx - pad) // sf]
                    w_eff = w_eff.at[py, px, ay, ax].add(conv_w[dy, dx])
    # (py, px, ay, ax, ci, co) -> (ay, ax, ci, py, px, co) -> (noff^2*Cin, sf^2*Cout)
    w_mat = jnp.transpose(w_eff, (2, 3, 4, 0, 1, 5)).reshape(
        noff * noff * cin, sf * sf * cout)
    starts = tuple(o + pad_lo for o in offs)
    return w_mat, starts, pad_lo, pad_hi


def _choose_bt(B, h, w, hp, wp, cin, cout, sf, noff, budget_bytes=10 << 20):
    """Largest batch tile whose live VMEM (all kernel-1 buffers) fits the budget."""
    n = sf * sf * cout
    wbytes = noff * noff * cin * n * 2

    def live_bytes(bt):
        m = bt * h * w
        return (2 * m * cin * 4                  # x tile (f32, double-buffered)
                + bt * hp * wp * cin * 2         # padded bf16 scratch
                + 2 * m * noff * noff * cin * 2  # im2col patches + concat temp (bf16)
                + 2 * m * n * 4                  # matmul output + temporaries (f32)
                + 2 * m * n * 2                  # y block (bf16, double-buffered)
                + wbytes)

    valid = [bt for bt in range(1, B + 1)
             if B % bt == 0 and (bt == B or (bt * h) % 8 == 0)]
    for bt in sorted(valid, reverse=True):
        if live_bytes(bt) <= budget_bytes:
            return bt
    return min(valid)


def _choose_th(Ho, Wo, cout, budget_bytes=6 << 20):
    """Row-tile for kernel 2: counts both the bf16 input and f32 output blocks,
    double-buffered, so the default scoped VMEM is never exceeded (v5e-safe)."""
    per_row = Wo * cout * (2 * 2 + 2 * 4)
    cands = [t for t in range(1, Ho + 1)
             if Ho % t == 0 and (t == Ho or (t * Wo) % 128 == 0)]
    for t in sorted(cands, reverse=True):
        if t * per_row <= budget_bytes:
            return t
    return min(cands)


def reconstruct_forward(x, conv_w, conv_b, bn_gamma, bn_beta,
                        *, scale_factor, kernel_size, eps=1e-5):
    B, n_patch, hidden = x.shape
    h = int(round(n_patch ** 0.5))
    w = h
    assert h * w == n_patch, "n_patch must be a perfect square"
    sf = int(scale_factor)
    cin = hidden
    cout = conv_w.shape[-1]
    Ho, Wo = h * sf, w * sf

    # Static precompute: phase-effective weights (tiny), bf16 for the MXU.
    w_mat, starts, pad_lo, pad_hi = _phase_weights(conv_w, sf, kernel_size)
    noff = len(starts)
    K = noff * noff * cin
    N = sf * sf * cout
    w_mat = w_mat.astype(jnp.bfloat16)
    bias_tiled = jnp.tile(conv_b.reshape(1, cout).astype(jnp.float32), (1, sf * sf))

    # Low-res NHWC input (== permute(0,2,1).view(B,C,h,w) in NHWC form); no HBM pad.
    xi = x.reshape(B, h, w, cin)
    hp, wp = h + pad_lo + pad_hi, w + pad_lo + pad_hi

    BT = _choose_bt(B, h, w, hp, wp, cin, cout, sf, noff)
    nblk = B // BT

    # ---- kernel 1: fused upsample + conv + bias + BN partial statistics ----
    y2, s1, s2 = pl.pallas_call(
        functools.partial(conv_phase_stats_kernel,
                          h=h, w=w, sf=sf, cout=cout, pad_lo=pad_lo, starts=starts),
        out_shape=(
            jax.ShapeDtypeStruct((B * h, sf * Wo * cout), jnp.bfloat16),
            jax.ShapeDtypeStruct((nblk, 1, N), jnp.float32),
            jax.ShapeDtypeStruct((nblk, 1, N), jnp.float32),
        ),
        grid=(nblk,),
        in_specs=[
            pl.BlockSpec((BT, h, w, cin), lambda b: (b, 0, 0, 0)),
            pl.BlockSpec((K, N), lambda b: (0, 0)),
            pl.BlockSpec((1, N), lambda b: (0, 0)),
        ],
        out_specs=(
            pl.BlockSpec((BT * h, sf * Wo * cout), lambda b: (b, 0)),
            pl.BlockSpec((1, 1, N), lambda b: (b, 0, 0)),
            pl.BlockSpec((1, 1, N), lambda b: (b, 0, 0)),
        ),
        scratch_shapes=[pltpu.VMEM((BT, hp, wp, cin), jnp.bfloat16)],
        compiler_params=pltpu.CompilerParams(
            dimension_semantics=("parallel",),      # no revisited output blocks
            vmem_limit_bytes=32 * 1024 * 1024),
    )(xi, w_mat, bias_tiled)

    # (B*h, sf*Wo*Cout) is row-major identical to NHWC (B, Ho, Wo, Cout): free view.
    yv = y2.reshape(B, Ho * Wo, cout)

    # BN scale/shift from the reduced partial statistics ((Cout,) math, hoisted).
    # TODO(synk): train-mode BatchNorm only; eval-mode would use running stats here.
    s1_tot = jnp.sum(s1.reshape(-1, cout), axis=0)
    s2_tot = jnp.sum(s2.reshape(-1, cout), axis=0)
    n_tot = float(B * Ho * Wo)
    mean = s1_tot / n_tot
    var = s2_tot / n_tot - mean * mean          # biased variance (PyTorch BN norm)
    inv = jax.lax.rsqrt(var + eps)
    gamma = bn_gamma.reshape(-1).astype(jnp.float32)
    beta = bn_beta.reshape(-1).astype(jnp.float32)
    scale = (gamma * inv).reshape(1, cout)
    shift = (beta - mean * gamma * inv).reshape(1, cout)

    # ---- kernel 2: BN apply + ReLU + NHWC -> NCHW, tiled over (batch, row blocks) ----
    TH = _choose_th(Ho, Wo, cout)
    out3 = pl.pallas_call(
        bn_relu_nchw_kernel,
        out_shape=jax.ShapeDtypeStruct((B, cout, Ho * Wo), jnp.float32),
        grid=(B, Ho // TH),
        in_specs=[
            pl.BlockSpec((1, TH * Wo, cout), lambda b, t: (b, t, 0)),
            pl.BlockSpec((1, cout), lambda b, t: (0, 0)),
            pl.BlockSpec((1, cout), lambda b, t: (0, 0)),
        ],
        out_specs=pl.BlockSpec((1, cout, TH * Wo), lambda b, t: (b, 0, t)),
        compiler_params=pltpu.CompilerParams(
            dimension_semantics=("parallel", "parallel")),
    )(yv, scale, shift)

    return out3.reshape(B, cout, Ho, Wo)


# ---------------------------------------------------------------------------
# Pure-JAX reference (for on-device correctness check)
# ---------------------------------------------------------------------------
def reference_forward(x, conv_w, conv_b, gamma, beta, *, scale_factor, kernel_size):
    B, n_patch, hidden = x.shape
    h = w = int(round(n_patch ** 0.5))
    xi = x.reshape(B, h, w, hidden)
    xi = jnp.repeat(jnp.repeat(xi, scale_factor, axis=1), scale_factor, axis=2)
    pad = 1 if kernel_size == 3 else 0
    y = jax.lax.conv_general_dilated(
        xi, conv_w, window_strides=(1, 1), padding=[(pad, pad), (pad, pad)],
        dimension_numbers=("NHWC", "HWIO", "NHWC"))
    y = y + conv_b.reshape(1, 1, 1, -1)
    mean = jnp.mean(y, axis=(0, 1, 2), keepdims=True)
    var = jnp.mean((y - mean) ** 2, axis=(0, 1, 2), keepdims=True)
    out = (y - mean) * jax.lax.rsqrt(var + 1e-5) * gamma.reshape(1, 1, 1, -1) \
        + beta.reshape(1, 1, 1, -1)
    out = jnp.maximum(out, 0.0)
    return jnp.transpose(out, (0, 3, 1, 2))


if __name__ == "__main__":
    # Shapes consistent with the module's forward:
    #   B=2, n_patch=16 (h=w=4), hidden(in_channels)=32, out_channels=16,
    #   kernel_size=3 (padding=1), scale_factor=2  ->  output (2, 16, 8, 8)
    B, n_patch, hidden = 2, 16, 32
    out_channels = 16
    kernel_size = 3
    scale_factor = 2

    key = jax.random.PRNGKey(0)
    kx, kw, kb = jax.random.split(key, 3)

    x = jax.random.normal(kx, (B, n_patch, hidden), dtype=jnp.float32)
    # Conv weights kept in HWIO layout: (kH, kW, Cin, Cout)
    conv_w = 0.05 * jax.random.normal(
        kw, (kernel_size, kernel_size, hidden, out_channels), dtype=jnp.float32)
    conv_b = 0.01 * jax.random.normal(kb, (1, out_channels), dtype=jnp.float32)
    bn_gamma = jnp.ones((1, out_channels), dtype=jnp.float32)
    bn_beta = jnp.zeros((1, out_channels), dtype=jnp.float32)

    fwd = jax.jit(functools.partial(reconstruct_forward,
                                    scale_factor=scale_factor,
                                    kernel_size=kernel_size))
    out = jax.block_until_ready(fwd(x, conv_w, conv_b, bn_gamma, bn_beta))

    ref = jax.block_until_ready(
        reference_forward(x, conv_w, conv_b, bn_gamma, bn_beta,
                          scale_factor=scale_factor, kernel_size=kernel_size))

    expected_shape = (B, out_channels,
                      int(n_patch ** 0.5) * scale_factor,
                      int(n_patch ** 0.5) * scale_factor)
    assert out.shape == expected_shape, (out.shape, expected_shape)
    assert bool(jnp.all(out >= 0.0)), "ReLU output must be non-negative"
    # bf16 MXU operands + bf16 intermediate introduce ~1e-2 absolute error.
    max_err = float(jnp.max(jnp.abs(out - ref)))
    mean_err = float(jnp.mean(jnp.abs(out - ref)))
    assert max_err < 5e-2, f"max mismatch vs pure-JAX reference: {max_err}"
    assert mean_err < 5e-3, f"mean mismatch vs pure-JAX reference: {mean_err}"

    print("KERNEL_OK")
</pallas_src>

<mosaic_0001>
module attributes {stable_mosaic.version = 11 : i64} {
  func.func @conv_phase_stats_kernel(%arg0: i32, %arg1: memref<2x4x4x32xf32, #tpu.memory_space<vmem>>, %arg2: memref<288x64xbf16, #tpu.memory_space<vmem>>, %arg3: memref<1x64xf32, #tpu.memory_space<vmem>>, %arg4: memref<8x256xbf16, #tpu.memory_space<vmem>>, %arg5: memref<1x1x64xf32, #tpu.memory_space<vmem>>, %arg6: memref<1x1x64xf32, #tpu.memory_space<vmem>>, %arg7: memref<2x6x6x32xbf16, #tpu.memory_space<vmem>>) attributes {dimension_semantics = [#tpu.dimension_semantics<parallel>], iteration_bounds = array<i64: 1>, scalar_prefetch = 0 : i64, scratch_operands = 1 : i64, tpu.core_type = #tpu.core_type<tc>, window_params = [{transform_indices = @transform_0, window_bounds = array<i64: 2, 4, 4, 32>}, {pipeline_mode = #tpu.pipeline_mode<synchronous>, transform_indices = @transform_1, window_bounds = array<i64: 288, 64>}, {pipeline_mode = #tpu.pipeline_mode<synchronous>, transform_indices = @transform_2, window_bounds = array<i64: 1, 64>}, {transform_indices = @transform_3, window_bounds = array<i64: 8, 256>}, {transform_indices = @transform_4, window_bounds = array<i64: 1, 1, 64>}, {transform_indices = @transform_5, window_bounds = array<i64: 1, 1, 64>}]} {
    %cst = arith.constant 0.000000e+00 : bf16
    %0 = vector.broadcast %cst : bf16 to vector<2x6x6x32xbf16>
    %c0 = arith.constant 0 : index
    %c0_0 = arith.constant 0 : index
    %c0_1 = arith.constant 0 : index
    %c0_2 = arith.constant 0 : index
    %1 = vector.load %arg7[%c0, %c0_0, %c0_1, %c0_2] : memref<2x6x6x32xbf16, #tpu.memory_space<vmem>>, vector<2x6x6x32xbf16>
    tpu.vector_store %arg7[%c0, %c0_0, %c0_1, %c0_2], %0 {strides = array<i32>} : memref<2x6x6x32xbf16, #tpu.memory_space<vmem>>, vector<2x6x6x32xbf16>,
    %c0_3 = arith.constant 0 : index
    %c0_4 = arith.constant 0 : index
    %c0_5 = arith.constant 0 : index
    %c0_6 = arith.constant 0 : index
    %2 = vector.load %arg1[%c0_3, %c0_4, %c0_5, %c0_6] : memref<2x4x4x32xf32, #tpu.memory_space<vmem>>, vector<2x4x4x32xf32>
    %3 = arith.truncf %2 : vector<2x4x4x32xf32> to vector<2x4x4x32xbf16>
    %c0_7 = arith.constant 0 : index
    %c1 = arith.constant 1 : index
    %c1_8 = arith.constant 1 : index
    %c0_9 = arith.constant 0 : index
    %4 = vector.load %arg7[%c0_7, %c1, %c1_8, %c0_9] : memref<2x6x6x32xbf16, #tpu.memory_space<vmem>>, vector<2x4x4x32xbf16>
    tpu.vector_store %arg7[%c0_7, %c1, %c1_8, %c0_9], %3 {strides = array<i32>} : memref<2x6x6x32xbf16, #tpu.memory_space<vmem>>, vector<2x4x4x32xbf16>,
    %c0_10 = arith.constant 0 : index
    %c0_11 = arith.constant 0 : index
    %c0_12 = arith.constant 0 : index
    %c0_13 = arith.constant 0 : index
    %5 = vector.load %arg7[%c0_10, %c0_11, %c0_12, %c0_13] : memref<2x6x6x32xbf16, #tpu.memory_space<vmem>>, vector<2x4x4x32xbf16>
    %c0_14 = arith.constant 0 : index
    %c0_15 = arith.constant 0 : index
    %c1_16 = arith.constant 1 : index
    %c0_17 = arith.constant 0 : index
    %6 = vector.load %arg7[%c0_14, %c0_15, %c1_16, %c0_17] : memref<2x6x6x32xbf16, #tpu.memory_space<vmem>>, vector<2x4x4x32xbf16>
    %c0_18 = arith.constant 0 : index
    %c0_19 = arith.constant 0 : index
    %c2 = arith.constant 2 : index
    %c0_20 = arith.constant 0 : index
    %7 = vector.load %arg7[%c0_18, %c0_19, %c2, %c0_20] : memref<2x6x6x32xbf16, #tpu.memory_space<vmem>>, vector<2x4x4x32xbf16>
    %c0_21 = arith.constant 0 : index
    %c1_22 = arith.constant 1 : index
    %c0_23 = arith.constant 0 : index
    %c0_24 = arith.constant 0 : index
    %8 = vector.load %arg7[%c0_21, %c1_22, %c0_23, %c0_24] : memref<2x6x6x32xbf16, #tpu.memory_space<vmem>>, vector<2x4x4x32xbf16>
    %c0_25 = arith.constant 0 : index
    %c1_26 = arith.constant 1 : index
    %c1_27 = arith.constant 1 : index
    %c0_28 = arith.constant 0 : index
    %9 = vector.load %arg7[%c0_25, %c1_26, %c1_27, %c0_28] : memref<2x6x6x32xbf16, #tpu.memory_space<vmem>>, vector<2x4x4x32xbf16>
    %c0_29 = arith.constant 0 : index
    %c1_30 = arith.constant 1 : index
    %c2_31 = arith.constant 2 : index
    %c0_32 = arith.constant 0 : index
    %10 = vector.load %arg7[%c0_29, %c1_30, %c2_31, %c0_32] : memref<2x6x6x32xbf16, #tpu.memory_space<vmem>>, vector<2x4x4x32xbf16>
    %c0_33 = arith.constant 0 : index
    %c2_34 = arith.constant 2 : index
    %c0_35 = arith.constant 0 : index
    %c0_36 = arith.constant 0 : index
    %11 = vector.load %arg7[%c0_33, %c2_34, %c0_35, %c0_36] : memref<2x6x6x32xbf16, #tpu.memory_space<vmem>>, vector<2x4x4x32xbf16>
    %c0_37 = arith.constant 0 : index
    %c2_38 = arith.constant 2 : index
    %c1_39 = arith.constant 1 : index
    %c0_40 = arith.constant 0 : index
    %12 = vector.load %arg7[%c0_37, %c2_38, %c1_39, %c0_40] : memref<2x6x6x32xbf16, #tpu.memory_space<vmem>>, vector<2x4x4x32xbf16>
    %c0_41 = arith.constant 0 : index
    %c2_42 = arith.constant 2 : index
    %c2_43 = arith.constant 2 : index
    %c0_44 = arith.constant 0 : index
    %13 = vector.load %arg7[%c0_41, %c2_42, %c2_43, %c0_44] : memref<2x6x6x32xbf16, #tpu.memory_space<vmem>>, vector<2x4x4x32xbf16>
    %14 = tpu.concatenate %5, %6, %7, %8, %9, %10, %11, %12, %13 in 3 : vector<2x4x4x32xbf16>, vector<2x4x4x32xbf16>, vector<2x4x4x32xbf16>, vector<2x4x4x32xbf16>, vector<2x4x4x32xbf16>, vector<2x4x4x32xbf16>, vector<2x4x4x32xbf16>, vector<2x4x4x32xbf16>, vector<2x4x4x32xbf16> -> vector<2x4x4x288xbf16>
    %15 = vector.shape_cast %14 : vector<2x4x4x288xbf16> to vector<32x288xbf16>
    %c0_45 = arith.constant 0 : index
    %c0_46 = arith.constant 0 : index
    %16 = vector.load %arg2[%c0_45, %c0_46] : memref<288x64xbf16, #tpu.memory_space<vmem>>, vector<288x64xbf16>
    %cst_47 = arith.constant dense<0.000000e+00> : vector<32x64xf32>
    %17 = tpu.matmul %15, %16, %cst_47 {dimension_numbers = #tpu.dot_dimension_numbers<[1], [0], [0], [1], [0, 0, 1, 1], [], []>} : vector<32x288xbf16>, vector<288x64xbf16>, vector<32x64xf32> -> vector<32x64xf32>
    %c0_48 = arith.constant 0 : index
    %c0_49 = arith.constant 0 : index
    %18 = vector.load %arg3[%c0_48, %c0_49] : memref<1x64xf32, #tpu.memory_space<vmem>>, vector<1x64xf32>
    %19 = vector.broadcast %18 : vector<1x64xf32> to vector<32x64xf32>
    %20 = arith.addf %17, %19 : vector<32x64xf32>
    %cst_50 = arith.constant dense<0.000000e+00> : vector<64xf32>
    %21 = vector.multi_reduction <add>, %20, %cst_50 [0] : vector<32x64xf32> to vector<64xf32>
    %22 = vector.shape_cast %21 : vector<64xf32> to vector<1x64xf32>
    %c0_51 = arith.constant 0 : index
    %c0_52 = arith.constant 0 : index
    %c0_53 = arith.constant 0 : index
    %23 = vector.load %arg5[%c0_51, %c0_52, %c0_53] : memref<1x1x64xf32, #tpu.memory_space<vmem>>, vector<1x1x64xf32>
    %24 = vector.shape_cast %23 : vector<1x1x64xf32> to vector<1x64xf32>
    %25 = vector.shape_cast %22 : vector<1x64xf32> to vector<1x1x64xf32>
    tpu.vector_store %arg5[%c0_51, %c0_52, %c0_53], %25 {strides = array<i32>} : memref<1x1x64xf32, #tpu.memory_space<vmem>>, vector<1x1x64xf32>,
    %26 = arith.mulf %20, %20 : vector<32x64xf32>
    %cst_54 = arith.constant dense<0.000000e+00> : vector<64xf32>
    %27 = vector.multi_reduction <add>, %26, %cst_54 [0] : vector<32x64xf32> to vector<64xf32>
    %28 = vector.shape_cast %27 : vector<64xf32> to vector<1x64xf32>
    %c0_55 = arith.constant 0 : index
    %c0_56 = arith.constant 0 : index
    %c0_57 = arith.constant 0 : index
    %29 = vector.load %arg6[%c0_55, %c0_56, %c0_57] : memref<1x1x64xf32, #tpu.memory_space<vmem>>, vector<1x1x64xf32>
    %30 = vector.shape_cast %29 : vector<1x1x64xf32> to vector<1x64xf32>
    %31 = vector.shape_cast %28 : vector<1x64xf32> to vector<1x1x64xf32>
    tpu.vector_store %arg6[%c0_55, %c0_56, %c0_57], %31 {strides = array<i32>} : memref<1x1x64xf32, #tpu.memory_space<vmem>>, vector<1x1x64xf32>,
    %32 = vector.extract_strided_slice %20 {offsets = [0, 0], sizes = [32, 32], strides = [1, 1]} : vector<32x64xf32> to vector<32x32xf32>
    %33 = arith.truncf %32 : vector<32x32xf32> to vector<32x32xbf16>
    %34 = vector.shape_cast %33 : vector<32x32xbf16> to vector<8x4x32xbf16>
    %35 = vector.extract_strided_slice %34 {offsets = [0, 0, 0], sizes = [8, 1, 32], strides = [1, 1, 1]} : vector<8x4x32xbf16> to vector<8x1x32xbf16>
    %36 = vector.shape_cast %35 : vector<8x1x32xbf16> to vector<8x32xbf16>
    %37 = vector.extract_strided_slice %34 {offsets = [0, 1, 0], sizes = [8, 1, 32], strides = [1, 1, 1]} : vector<8x4x32xbf16> to vector<8x1x32xbf16>
    %38 = vector.shape_cast %37 : vector<8x1x32xbf16> to vector<8x32xbf16>
    %39 = vector.extract_strided_slice %34 {offsets = [0, 2, 0], sizes = [8, 1, 32], strides = [1, 1, 1]} : vector<8x4x32xbf16> to vector<8x1x32xbf16>
    %40 = vector.shape_cast %39 : vector<8x1x32xbf16> to vector<8x32xbf16>
    %41 = vector.extract_strided_slice %34 {offsets = [0, 3, 0], sizes = [8, 1, 32], strides = [1, 1, 1]} : vector<8x4x32xbf16> to vector<8x1x32xbf16>
    %42 = vector.shape_cast %41 : vector<8x1x32xbf16> to vector<8x32xbf16>
    %43 = tpu.concatenate %36, %38, %40, %42 in 1 : vector<8x32xbf16>, vector<8x32xbf16>, vector<8x32xbf16>, vector<8x32xbf16> -> vector<8x128xbf16>
    %c0_58 = arith.constant 0 : index
    %c0_59 = arith.constant 0 : index
    %44 = vector.load %arg4[%c0_58, %c0_59] : memref<8x256xbf16, #tpu.memory_space<vmem>>, vector<8x128xbf16>
    tpu.vector_store %arg4[%c0_58, %c0_59], %43 {strides = array<i32>} : memref<8x256xbf16, #tpu.memory_space<vmem>>, vector<8x128xbf16>,
    %45 = vector.extract_strided_slice %20 {offsets = [0, 32], sizes = [32, 32], strides = [1, 1]} : vector<32x64xf32> to vector<32x32xf32>
    %46 = arith.truncf %45 : vector<32x32xf32> to vector<32x32xbf16>
    %47 = vector.shape_cast %46 : vector<32x32xbf16> to vector<8x4x32xbf16>
    %48 = vector.extract_strided_slice %47 {offsets = [0, 0, 0], sizes = [8, 1, 32], strides = [1, 1, 1]} : vector<8x4x32xbf16> to vector<8x1x32xbf16>
    %49 = vector.shape_cast %48 : vector<8x1x32xbf16> to vector<8x32xbf16>
    %50 = vector.extract_strided_slice %47 {offsets = [0, 1, 0], sizes = [8, 1, 32], strides = [1, 1, 1]} : vector<8x4x32xbf16> to vector<8x1x32xbf16>
    %51 = vector.shape_cast %50 : vector<8x1x32xbf16> to vector<8x32xbf16>
    %52 = vector.extract_strided_slice %47 {offsets = [0, 2, 0], sizes = [8, 1, 32], strides = [1, 1, 1]} : vector<8x4x32xbf16> to vector<8x1x32xbf16>
    %53 = vector.shape_cast %52 : vector<8x1x32xbf16> to vector<8x32xbf16>
    %54 = vector.extract_strided_slice %47 {offsets = [0, 3, 0], sizes = [8, 1, 32], strides = [1, 1, 1]} : vector<8x4x32xbf16> to vector<8x1x32xbf16>
    %55 = vector.shape_cast %54 : vector<8x1x32xbf16> to vector<8x32xbf16>
    %56 = tpu.concatenate %49, %51, %53, %55 in 1 : vector<8x32xbf16>, vector<8x32xbf16>, vector<8x32xbf16>, vector<8x32xbf16> -> vector<8x128xbf16>
    %c0_60 = arith.constant 0 : index
    %c128 = arith.constant 128 : index
    %57 = vector.load %arg4[%c0_60, %c128] : memref<8x256xbf16, #tpu.memory_space<vmem>>, vector<8x128xbf16>
    tpu.vector_store %arg4[%c0_60, %c128], %56 {strides = array<i32>} : memref<8x256xbf16, #tpu.memory_space<vmem>>, vector<8x128xbf16>,
    return
  }
  func.func @transform_0(%arg0: i32) -> (i32, i32, i32, i32) {
    %c0_i32 = arith.constant 0 : i32
    %c0_i32_0 = arith.constant 0 : i32
    %c0_i32_1 = arith.constant 0 : i32
    %c0_i32_2 = arith.constant 0 : i32
    return %arg0, %c0_i32, %c0_i32_0, %c0_i32_1 : i32, i32, i32, i32
  }
  func.func @transform_1(%arg0: i32) -> (i32, i32) {
    %c0_i32 = arith.constant 0 : i32
    %c0_i32_0 = arith.constant 0 : i32
    %c0_i32_1 = arith.constant 0 : i32
    return %c0_i32, %c0_i32_0 : i32, i32
  }
  func.func @transform_2(%arg0: i32) -> (i32, i32) {
    %c0_i32 = arith.constant 0 : i32
    %c0_i32_0 = arith.constant 0 : i32
    %c0_i32_1 = arith.constant 0 : i32
    return %c0_i32, %c0_i32_0 : i32, i32
  }
  func.func @transform_3(%arg0: i32) -> (i32, i32) {
    %c0_i32 = arith.constant 0 : i32
    %c0_i32_0 = arith.constant 0 : i32
    return %arg0, %c0_i32 : i32, i32
  }
  func.func @transform_4(%arg0: i32) -> (i32, i32, i32) {
    %c0_i32 = arith.constant 0 : i32
    %c0_i32_0 = arith.constant 0 : i32
    %c0_i32_1 = arith.constant 0 : i32
    return %arg0, %c0_i32, %c0_i32_0 : i32, i32, i32
  }
  func.func @transform_5(%arg0: i32) -> (i32, i32, i32) {
    %c0_i32 = arith.constant 0 : i32
    %c0_i32_0 = arith.constant 0 : i32
    %c0_i32_1 = arith.constant 0 : i32
    return %arg0, %c0_i32, %c0_i32_0 : i32, i32, i32
  }
}

module attributes {stable_mosaic.version = 11 : i64} {
  func.func @bn_relu_nchw_kernel(%arg0: i32, %arg1: i32, %arg2: memref<1x64x16xbf16, #tpu.memory_space<vmem>>, %arg3: memref<1x16xf32, #tpu.memory_space<vmem>>, %arg4: memref<1x16xf32, #tpu.memory_space<vmem>>, %arg5: memref<1x16x64xf32, #tpu.memory_space<vmem>>) attributes {dimension_semantics = [#tpu.dimension_semantics<parallel>, #tpu.dimension_semantics<parallel>], iteration_bounds = array<i64: 2, 1>, scalar_prefetch = 0 : i64, scratch_operands = 0 : i64, tpu.core_type = #tpu.core_type<tc>, window_params = [{transform_indices = @transform_0, window_bounds = array<i64: 1, 64, 16>}, {pipeline_mode = #tpu.pipeline_mode<synchronous>, transform_indices = @transform_1, window_bounds = array<i64: 1, 16>}, {pipeline_mode = #tpu.pipeline_mode<synchronous>, transform_indices = @transform_2, window_bounds = array<i64: 1, 16>}, {transform_indices = @transform_3, window_bounds = array<i64: 1, 16, 64>}]} {
    %c0 = arith.constant 0 : index
    %c0_0 = arith.constant 0 : index
    %c0_1 = arith.constant 0 : index
    %0 = vector.load %arg2[%c0, %c0_0, %c0_1] : memref<1x64x16xbf16, #tpu.memory_space<vmem>>, vector<1x64x16xbf16>
    %1 = vector.shape_cast %0 : vector<1x64x16xbf16> to vector<64x16xbf16>
    %2 = arith.extf %1 : vector<64x16xbf16> to vector<64x16xf32>
    %c0_2 = arith.constant 0 : index
    %c0_3 = arith.constant 0 : index
    %3 = vector.load %arg3[%c0_2, %c0_3] : memref<1x16xf32, #tpu.memory_space<vmem>>, vector<1x16xf32>
    %4 = vector.broadcast %3 : vector<1x16xf32> to vector<64x16xf32>
    %5 = arith.mulf %2, %4 : vector<64x16xf32>
    %c0_4 = arith.constant 0 : index
    %c0_5 = arith.constant 0 : index
    %6 = vector.load %arg4[%c0_4, %c0_5] : memref<1x16xf32, #tpu.memory_space<vmem>>, vector<1x16xf32>
    %7 = vector.broadcast %6 : vector<1x16xf32> to vector<64x16xf32>
    %8 = arith.addf %5, %7 : vector<64x16xf32>
    %cst = arith.constant 0.000000e+00 : f32
    %9 = vector.broadcast %cst : f32 to vector<64x16xf32>
    %10 = arith.maximumf %8, %9 : vector<64x16xf32>
    %11 = tpu.transpose %10, [1, 0] : vector<64x16xf32> -> vector<16x64xf32>
    %c0_6 = arith.constant 0 : index
    %c0_7 = arith.constant 0 : index
    %c0_8 = arith.constant 0 : index
    %12 = vector.load %arg5[%c0_6, %c0_7, %c0_8] : memref<1x16x64xf32, #tpu.memory_space<vmem>>, vector<1x16x64xf32>
    %13 = vector.shape_cast %12 : vector<1x16x64xf32> to vector<16x64xf32>
    %14 = vector.shape_cast %11 : vector<16x64xf32> to vector<1x16x64xf32>
    tpu.vector_store %arg5[%c0_6, %c0_7, %c0_8], %14 {strides = array<i32>} : memref<1x16x64xf32, #tpu.memory_space<vmem>>, vector<1x16x64xf32>,
    return
  }
  func.func @transform_0(%arg0: i32, %arg1: i32) -> (i32, i32, i32) {
    %c0_i32 = arith.constant 0 : i32
    %c0_i32_0 = arith.constant 0 : i32
    return %arg0, %arg1, %c0_i32 : i32, i32, i32
  }
  func.func @transform_1(%arg0: i32, %arg1: i32) -> (i32, i32) {
    %c0_i32 = arith.constant 0 : i32
    %c0_i32_0 = arith.constant 0 : i32
    %c0_i32_1 = arith.constant 0 : i32
    return %c0_i32, %c0_i32_0 : i32, i32
  }
  func.func @transform_2(%arg0: i32, %arg1: i32) -> (i32, i32) {
    %c0_i32 = arith.constant 0 : i32
    %c0_i32_0 = arith.constant 0 : i32
    %c0_i32_1 = arith.constant 0 : i32
    return %c0_i32, %c0_i32_0 : i32, i32
  }
  func.func @transform_3(%arg0: i32, %arg1: i32) -> (i32, i32, i32) {
    %c0_i32 = arith.constant 0 : i32
    %c0_i32_0 = arith.constant 0 : i32
    return %arg0, %c0_i32, %arg1 : i32, i32, i32
  }
}

</mosaic_0001>

<llo_original>
// kernel: reconstruct_forward.3
$region0: #{reconstruct_forward.3}
  #allocation0 [shape = 'u32[]', space=smem, size = 0x4, offset = 0x4, fixed_abs, tag = 'smem constant byte address 0x4 - core index']
  #allocation1 [shape = 'u32[72,128]{1,0:T(1,128)}', space=vmem, size = 0x9000, scoped, tag = 'internal scratch']
  %s0 = inlined_call_operand.vmem [shape: bf16[2,64,16], index: 0, kind: input, shape index: {}]
  %s1 = inlined_call_operand.vmem [shape: f32[1,16], index: 1, kind: input, shape index: {}]
  %s2 = inlined_call_operand.vmem [shape: f32[1,16], index: 2, kind: input, shape index: {}]
  %s3 = inlined_call_operand.vmem [shape: f32[2,16,64], index: 3, kind: output, shape index: {}]
  %s4 = sld [smem:[#allocation0]]
  $region45: #{reconstruct_forward.3} parent=0
    _
  %s6 = ssub.s32 1, %s4
  %s7 = scalar_select 0, %s6, %s4
  loop: start=0, step=1, limit=4
  $region2: #{reconstruct_forward.3} parent=0 // loop_pre_header
    _
  $region3: #{reconstruct_forward.3} parent=0 // loop_header
    %s9 = sphi 0, %s13
    %p10 = scmp.ge.s32.totalorder %s9, 4
    %s16 = sphi 0, %s28
    %s17 = sphi 0, %s24
    %s18 = sphi 0, %s16
    %s19 = sphi 0, %s17
    %s20 = sphi 0, %s18
    %s21 = sphi 0, %s19
    %s33 = sphi 0, %s35
    %s36 = sphi 0, %s33
    %s37 = sphi 0, %s36
    %s53 = sphi 0, %s37
    %s57 = sphi 0, %s57
    %s59 = sphi 0, %s57
    %s60 = sphi 0, %s59
    %s74 = sphi 0, %s60
    %s78 = sphi 0, %s78
    %s80 = sphi 0, %s78
    %s81 = sphi 0, %s80
    %s95 = sphi 0, %s81
    %s103 = sphi 0, %s105
    %s106 = sphi 0, %s103
    %s107 = sphi 0, %s106
    %s123 = sphi 0, %s107
  $region4: #{reconstruct_forward.3} parent=0 // loop_header_branch
    %12 = sbr.rel (%p10) target = $region8
  $region5: #{reconstruct_forward.3} parent=0 // loop_body
    %s14 = ssub.s32 %s9, 1
    %s15 = ssub.s32 %s9, 2
    %s22 = sadd.s32 1, %s17
    %p23 = scmp.ge.s32.totalorder %s22, 1
    %s24 = scalar_select %p23, 0, %s22
    %s25 = sadd.s32 1, %s16
    %s26 = scalar_select %p23, %s25, %s16
    %p27 = scmp.ge.s32.totalorder %s26, 2
    %s28 = scalar_select %p27, 0, %s26
    %s29 = ssub.s32 %s16, %s28
    %s30 = ssub.s32 %s17, %s24
    %s31 = sor.u32 %s29, %s30
    %p32 = scmp.eq.s32.totalorder %s31, 0
    %s34 = sadd.s32 %s33, 1
    %s35 = scalar_select %p32, %s33, %s34
    %p38 = pneg %p32
    %p39 = scmp.eq.s32.totalorder %s9, 1
    %p40 = por %p38, %p39
    %p41 = scmp.ne.s32.totalorder %s33, %s36
    %p42 = scmp.eq.s32.totalorder %s9, 0
    %p43 = por %p41, %p42
    %p44 = scmp.ne.s32.totalorder %s33, %s36
    %p45 = scmp.eq.s32.totalorder %s14, 1
    %p46 = por %p44, %p45
    %p47 = scmp.ne.s32.totalorder %s36, %s37
    %p48 = scmp.eq.s32.totalorder %s14, 0
    %p49 = por %p47, %p48
    %p50 = scmp.ne.s32.totalorder %s36, %s37
    %p51 = scmp.eq.s32.totalorder %s15, 1
    %p52 = por %p50, %p51
    %p54 = scmp.ne.s32.totalorder %s37, %s53
    %p55 = scmp.eq.s32.totalorder %s15, 0
    %p56 = por %p54, %p55
    %s58 = sadd.s32 %s57, 1
    %p61 = scmp.eq.s32.totalorder %s9, 1
    %p62 = scmp.ne.s32.totalorder %s57, %s59
    %p63 = scmp.eq.s32.totalorder %s9, 0
    %p64 = por %p62, %p63
    %p65 = scmp.ne.s32.totalorder %s57, %s59
    %p66 = scmp.eq.s32.totalorder %s14, 1
    %p67 = por %p65, %p66
    %p68 = scmp.ne.s32.totalorder %s59, %s60
    %p69 = scmp.eq.s32.totalorder %s14, 0
    %p70 = por %p68, %p69
    %p71 = scmp.ne.s32.totalorder %s59, %s60
    %p72 = scmp.eq.s32.totalorder %s15, 1
    %p73 = por %p71, %p72
    %p75 = scmp.ne.s32.totalorder %s60, %s74
    %p76 = scmp.eq.s32.totalorder %s15, 0
    %p77 = por %p75, %p76
    %s79 = sadd.s32 %s78, 1
    %p82 = scmp.eq.s32.totalorder %s9, 1
    %p83 = scmp.ne.s32.totalorder %s78, %s80
    %p84 = scmp.eq.s32.totalorder %s9, 0
    %p85 = por %p83, %p84
    %p86 = scmp.ne.s32.totalorder %s78, %s80
    %p87 = scmp.eq.s32.totalorder %s14, 1
    %p88 = por %p86, %p87
    %p89 = scmp.ne.s32.totalorder %s80, %s81
    %p90 = scmp.eq.s32.totalorder %s14, 0
    %p91 = por %p89, %p90
    %p92 = scmp.ne.s32.totalorder %s80, %s81
    %p93 = scmp.eq.s32.totalorder %s15, 1
    %p94 = por %p92, %p93
    %p96 = scmp.ne.s32.totalorder %s81, %s95
    %p97 = scmp.eq.s32.totalorder %s15, 0
    %p98 = por %p96, %p97
    %s99 = ssub.s32 %s16, %s28
    %s100 = ssub.s32 %s17, %s24
    %s101 = sor.u32 %s99, %s100
    %p102 = scmp.eq.s32.totalorder %s101, 0
    %s104 = sadd.s32 %s103, 1
    %s105 = scalar_select %p102, %s103, %s104
    %p108 = pneg %p102
    %p109 = scmp.eq.s32.totalorder %s9, 1
    %p110 = por %p108, %p109
    %p111 = scmp.ne.s32.totalorder %s103, %s106
    %p112 = scmp.eq.s32.totalorder %s9, 0
    %p113 = por %p111, %p112
    %p114 = scmp.ne.s32.totalorder %s103, %s106
    %p115 = scmp.eq.s32.totalorder %s14, 1
    %p116 = por %p114, %p115
    %p117 = scmp.ne.s32.totalorder %s106, %s107
    %p118 = scmp.eq.s32.totalorder %s14, 0
    %p119 = por %p117, %p118
    %p120 = scmp.ne.s32.totalorder %s106, %s107
    %p121 = scmp.eq.s32.totalorder %s15, 1
    %p122 = por %p120, %p121
    %p124 = scmp.ne.s32.totalorder %s107, %s123
    %p125 = scmp.eq.s32.totalorder %s15, 0
    %p126 = por %p124, %p125
    %p127 = scmp.le.s32.totalorder 1, %s9
    %p128 = scmp.lt.s32.totalorder %s9, 3
    %p129 = pnand %p127, %p128
    %p130 = pneg %p129
    // Predicated region
    $region9: #{reconstruct_forward.3} parent=5 // pred_check
      _
    $region10: #{reconstruct_forward.3} parent=5 // pred_check_branch
      %132 = sbr.rel (%p129) target = $region12
    $region11: #{reconstruct_forward.3} parent=5 // pred_region
      %s133 = ssub.s32 %s9, 1
      // Predicated region
      $region13: #{reconstruct_forward.3} parent=11 // pred_check
        %p134 = pneg %p70
      $region14: #{reconstruct_forward.3} parent=11 // pred_check_branch
        %136 = sbr.rel (%p134) target = $region16
      $region15: #{reconstruct_forward.3} parent=11 // pred_region
        _
      $region16: #{reconstruct_forward.3} parent=11 // pred_fallthru
        _
      // Predicated region
      $region17: #{reconstruct_forward.3} parent=11 // pred_check
        %p137 = pneg %p91
      $region18: #{reconstruct_forward.3} parent=11 // pred_check_branch
        %139 = sbr.rel (%p137) target = $region20
      $region19: #{reconstruct_forward.3} parent=11 // pred_region
        _
      $region20: #{reconstruct_forward.3} parent=11 // pred_fallthru
        _
    $region12: #{reconstruct_forward.3} parent=5 // pred_fallthru
      _
    %p140 = scmp.lt.s32.totalorder %s9, 2
    // Predicated region
    $region21: #{reconstruct_forward.3} parent=5 // pred_check
      %p141 = pneg %p140
    $region22: #{reconstruct_forward.3} parent=5 // pred_check_branch
      %143 = sbr.rel (%p141) target = $region24
    $region23: #{reconstruct_forward.3} parent=5 // pred_region
      // Predicated region
      $region25: #{reconstruct_forward.3} parent=23 // pred_check
        %p144 = pneg %p43
      $region26: #{reconstruct_forward.3} parent=23 // pred_check_branch
        %146 = sbr.rel (%p144) target = $region28
      $region27: #{reconstruct_forward.3} parent=23 // pred_region
        %s147 = smul.u32 8, %s17
        %p148 = scmp.lt.s32.totalorder %s16, 1
        %s149 = scalar_select %p148, %s16, 1
        %p150 = scmp.lt.s32.totalorder %s147, 7
        %s151 = scalar_select %p150, %s147, 7
        %s152 = smul.addr %s149, 8
        %s153 = sadd.s32 %s151, %s152
        %s154 = smul.addr %s153, 4
        %s155 = scalar_lea.vmem %s0, %s154
        %s156 = smul.u32 8, %s17
      $region28: #{reconstruct_forward.3} parent=23 // pred_fallthru
        _
    $region24: #{reconstruct_forward.3} parent=5 // pred_fallthru
      _
    %p157 = scmp.le.s32.totalorder 1, %s9
    %p158 = scmp.lt.s32.totalorder %s9, 3
    %p159 = pnand %p157, %p158
    %p160 = pneg %p159
    // Predicated region
    $region29: #{reconstruct_forward.3} parent=5 // pred_check
      _
    $region30: #{reconstruct_forward.3} parent=5 // pred_check_branch
      %162 = sbr.rel (%p159) target = $region32
    $region31: #{reconstruct_forward.3} parent=5 // pred_region
      %s163 = ssub.s32 %s9, 1
      %s164 = smul.u32 8, %s19
      %p165 = scmp.lt.s32.totalorder %s18, 1
      %s166 = scalar_select %p165, %s18, 1
      %p167 = scmp.lt.s32.totalorder %s164, 7
      %s168 = scalar_select %p167, %s164, 7
      %s169 = smul.addr %s166, 8
      %s170 = sadd.s32 %s168, %s169
      %s171 = smul.addr %s170, 4
      %s172 = scalar_lea.vmem %s0, %s171
      %p173 = pneg %p49
      %p174 = pneg %p46
      %p175 = pneg %p70
      %p176 = pneg %p67
      %p177 = pneg %p91
      %p178 = pneg %p88
      %p179 = pneg %p119
      %p180 = pneg %p116
      %p181 = scmp.lt.s32.totalorder %s18, 1
      %s182 = scalar_select %p181, %s18, 1
      %p183 = scmp.lt.s32.totalorder %s19, 0
      %s184 = scalar_select %p183, %s19, 0
      %s185 = smul.addr %s182, 2
      %s186 = sadd.s32 %s184, %s185
      %s187 = smul.addr %s186, 8
      %s188 = scalar_lea.vmem %s3, %s187
      %s189 = smul.u32 8, %s19
      %p190 = scmp.lt.s32.totalorder %s18, 1
      %s191 = scalar_select %p190, %s18, 1
      %p192 = scmp.lt.s32.totalorder %s189, 7
      %s193 = scalar_select %p192, %s189, 7
      %s194 = smul.addr %s191, 8
      %s195 = sadd.s32 %s193, %s194
      %s196 = smul.addr %s195, 4
      %s197 = scalar_lea.vmem %s0, %s196
      %s198 = smul.u32 8, %s19
      %p199 = scmp.lt.s32.totalorder %s18, 1
      %s200 = scalar_select %p199, %s18, 1
      %p201 = scmp.lt.s32.totalorder %s19, 0
      %s202 = scalar_select %p201, %s19, 0
      %s203 = smul.addr %s200, 2
      %s204 = sadd.s32 %s202, %s203
      %s205 = smul.addr %s204, 8
      %s206 = scalar_lea.vmem %s3, %s205
      %v207 = vld [vmem:[%s197] sm:$0xf]
      %v208 = vld [vmem:[%s197 + $0x4] sm:$0xf]
      %v209 = vld [vmem:[%s197 + $0x8] sm:$0xf]
      %v210 = vld [vmem:[%s197 + $0xc] sm:$0xf]
      %v211 = vld [vmem:[%s197 + $0x10] sm:$0xf]
      %v212 = vld [vmem:[%s197 + $0x14] sm:$0xf]
      %v213 = vld [vmem:[%s197 + $0x18] sm:$0xf]
      %v214 = vld [vmem:[%s197 + $0x1c] sm:$0xf]
      %v215 = vunpack.c.l.bf16 %v207
      %v216 = vunpack.c.l.bf16 %v208
      %v217 = vunpack.c.l.bf16 %v209
      %v218 = vunpack.c.l.bf16 %v210
      %v219 = vunpack.c.l.bf16 %v211
      %v220 = vunpack.c.l.bf16 %v212
      %v221 = vunpack.c.l.bf16 %v213
      %v222 = vunpack.c.l.bf16 %v214
      %v223 = vld [vmem:[%s1] sm:$0x1]
      %v225 = vperm.slane %v223, 0
      %v227 = vmul.f32 %v215, %v225
      %v228 = vmul.f32 %v216, %v225
      %v229 = vmul.f32 %v217, %v225
      %v230 = vmul.f32 %v218, %v225
      %v231 = vmul.f32 %v219, %v225
      %v232 = vmul.f32 %v220, %v225
      %v233 = vmul.f32 %v221, %v225
      %v234 = vmul.f32 %v222, %v225
      %v235 = vld [vmem:[%s2] sm:$0x1]
      %v237 = vperm.slane %v235, 0
      %v239 = vadd.f32 %v227, %v237
      %v240 = vadd.f32 %v228, %v237
      %v241 = vadd.f32 %v229, %v237
      %v242 = vadd.f32 %v230, %v237
      %v243 = vadd.f32 %v231, %v237
      %v244 = vadd.f32 %v232, %v237
      %v245 = vadd.f32 %v233, %v237
      %v246 = vadd.f32 %v234, %v237
      %v247 = vmax.f32 %v239, 0.0
      %v248 = vmax.f32 %v240, 0.0
      %v249 = vmax.f32 %v241, 0.0
      %v250 = vmax.f32 %v242, 0.0
      %v251 = vmax.f32 %v243, 0.0
      %v252 = vmax.f32 %v244, 0.0
      %v253 = vmax.f32 %v245, 0.0
      %v254 = vmax.f32 %v246, 0.0
      %255 = vxpose.xlu0.b32.start [1/16] %v247, 128
      %256 = vxpose.xlu0.b32.cont [2/16] %v248, 128
      %257 = vxpose.xlu0.b32.cont [3/16] %v249, 128
      %258 = vxpose.xlu0.b32.cont [4/16] %v250, 128
      %259 = vxpose.xlu0.b32.cont [5/16] %v251, 128
      %260 = vxpose.xlu0.b32.cont [6/16] %v252, 128
      %261 = vxpose.xlu0.b32.cont [7/16] %v253, 128
      %262 = vxpose.xlu0.b32.cont [8/16] %v254, 128
      %263 = vxpose.xlu0.b32.cont [9/16] 0.0, 128
      %264 = vxpose.xlu0.b32.cont [10/16] 0.0, 128
      %265 = vxpose.xlu0.b32.cont [11/16] 0.0, 128
      %266 = vxpose.xlu0.b32.cont [12/16] 0.0, 128
      %267 = vxpose.xlu0.b32.cont [13/16] 0.0, 128
      %268 = vxpose.xlu0.b32.cont [14/16] 0.0, 128
      %269 = vxpose.xlu0.b32.cont [15/16] 0.0, 128
      %270 = vxpose.xlu0.b32.end [16/16] 0.0, 128
      %v271 = vpop.trf.xlu0
      %v272 = vpop.trf.xlu0
      %v273 = vpop.trf.xlu0
      %v274 = vpop.trf.xlu0
      %v275 = vpop.trf.xlu0
      %v276 = vpop.trf.xlu0
      %v277 = vpop.trf.xlu0
      %v278 = vpop.trf.xlu0
      %v279 = vpop.trf.xlu0
      %v280 = vpop.trf.xlu0
      %v281 = vpop.trf.xlu0
      %v282 = vpop.trf.xlu0
      %v283 = vpop.trf.xlu0
      %v284 = vpop.trf.xlu0
      %v285 = vpop.trf.xlu0
      %v286 = vpop.trf.xlu0
      %vm287 = vcmask 523264
      %288 = vst.msk [vmem:[%s206] sm:$0xff] %vm287, %v271
      %289 = vst.msk [vmem:[%s206 + $0x8] sm:$0xff] %vm287, %v272
      %p290 = scmp.lt.s32.totalorder %s18, 1
      %s291 = scalar_select %p290, %s18, 1
      %p292 = scmp.lt.s32.totalorder %s19, 0
      %s293 = scalar_select %p292, %s19, 0
      %s294 = smul.addr %s291, 2
      %s295 = sadd.s32 %s293, %s294
      %s296 = smul.addr %s295, 8
      %s297 = scalar_lea.vmem %s3, %s296
      // Predicated region
      $region33: #{reconstruct_forward.3} parent=31 // pred_check
        %p298 = pneg %p116
      $region34: #{reconstruct_forward.3} parent=31 // pred_check_branch
        %300 = sbr.rel (%p298) target = $region36
      $region35: #{reconstruct_forward.3} parent=31 // pred_region
        _
      $region36: #{reconstruct_forward.3} parent=31 // pred_fallthru
        _
    $region32: #{reconstruct_forward.3} parent=5 // pred_fallthru
      _
    %p301 = scmp.le.s32.totalorder 2, %s9
    // Predicated region
    $region37: #{reconstruct_forward.3} parent=5 // pred_check
      %p302 = pneg %p301
    $region38: #{reconstruct_forward.3} parent=5 // pred_check_branch
      %304 = sbr.rel (%p302) target = $region40
    $region39: #{reconstruct_forward.3} parent=5 // pred_region
      %s305 = ssub.s32 %s9, 2
      // Predicated region
      $region41: #{reconstruct_forward.3} parent=39 // pred_check
        %p306 = pneg %p122
      $region42: #{reconstruct_forward.3} parent=39 // pred_check_branch
        %308 = sbr.rel (%p306) target = $region44
      $region43: #{reconstruct_forward.3} parent=39 // pred_region
        %p309 = scmp.lt.s32.totalorder %s20, 1
        %s310 = scalar_select %p309, %s20, 1
        %p311 = scmp.lt.s32.totalorder %s21, 0
        %s312 = scalar_select %p311, %s21, 0
        %s313 = smul.addr %s310, 2
        %s314 = sadd.s32 %s312, %s313
        %s315 = smul.addr %s314, 8
        %s316 = scalar_lea.vmem %s3, %s315
      $region44: #{reconstruct_forward.3} parent=39 // pred_fallthru
        _
    $region40: #{reconstruct_forward.3} parent=5 // pred_fallthru
      _
  $region6: #{reconstruct_forward.3} parent=0 // loop_footer
    %s13 = sadd.s32 1, %s9
  $region7: #{reconstruct_forward.3} parent=0 // loop_footer_branch
    %8 = sbr.rel target = $region3
  $region8: #{reconstruct_forward.3} parent=0 // loop_exit
    _

// kernel: reconstruct_forward.2
$region0: #{reconstruct_forward.2}
  #allocation0 [shape = 'u32[]', space=smem, size = 0x4, offset = 0x4, fixed_abs, tag = 'smem constant byte address 0x4 - core index']
  #allocation1 [shape = 'u32[72,128]{1,0:T(1,128)}', space=vmem, size = 0x9000, scoped, tag = 'internal scratch']
  #allocation2 [shape = 'bf16[2,6,6,32]{3,2,1,0:T(8,128)(2,1)}', space=vmem, size = 0x6000, scoped, tag = 'scratch operand']
  %s0 = inlined_call_operand.vmem [shape: f32[2,4,4,32], index: 0, kind: input, shape index: {}]
  %s1 = inlined_call_operand.vmem [shape: bf16[288,64], index: 1, kind: input, shape index: {}]
  %s2 = inlined_call_operand.vmem [shape: f32[1,64], index: 2, kind: input, shape index: {}]
  %s3 = inlined_call_operand.vmem [shape: bf16[8,256], index: 3, kind: output, shape index: {0}]
  %s4 = inlined_call_operand.vmem [shape: f32[1,1,64], index: 4, kind: output, shape index: {1}]
  %s5 = inlined_call_operand.vmem [shape: f32[1,1,64], index: 5, kind: output, shape index: {2}]
  %6 = xla_tuple %s3, %s4, %s5
  %s7 = sld [smem:[#allocation0]]
  $region38: #{reconstruct_forward.2} parent=0
    _
  %s9 = ssub.s32 1, %s7
  %s10 = scalar_select 0, %s9, %s7
  // Predicated region
  $region2: #{reconstruct_forward.2} parent=0 // pred_check
    _
  $region3: #{reconstruct_forward.2} parent=0 // pred_check_branch
    %12 = sbr.rel (0) target = $region5
  $region4: #{reconstruct_forward.2} parent=0 // pred_region
    _
  $region5: #{reconstruct_forward.2} parent=0 // pred_fallthru
    _
  // Predicated region
  $region6: #{reconstruct_forward.2} parent=0 // pred_check
    _
  $region7: #{reconstruct_forward.2} parent=0 // pred_check_branch
    %14 = sbr.rel (0) target = $region9
  $region8: #{reconstruct_forward.2} parent=0 // pred_region
    _
  $region9: #{reconstruct_forward.2} parent=0 // pred_fallthru
    _
  // Predicated region
  $region10: #{reconstruct_forward.2} parent=0 // pred_check
    _
  $region11: #{reconstruct_forward.2} parent=0 // pred_check_branch
    %16 = sbr.rel (0) target = $region13
  $region12: #{reconstruct_forward.2} parent=0 // pred_region
    _
  $region13: #{reconstruct_forward.2} parent=0 // pred_fallthru
    _
  %vm18 = vcmask 256000
  %19 = vst.msk [vmem:[#allocation2] sm:$0x7] %vm18, 0
  %20 = vst.msk [vmem:[#allocation2 + $0x4] sm:$0x7] %vm18, 0
  %21 = vst.msk [vmem:[#allocation2 + $0x8] sm:$0x7] %vm18, 0
  %22 = vst.msk [vmem:[#allocation2 + $0xc] sm:$0x7] %vm18, 0
  %23 = vst.msk [vmem:[#allocation2 + $0x10] sm:$0x7] %vm18, 0
  %24 = vst.msk [vmem:[#allocation2 + $0x14] sm:$0x7] %vm18, 0
  %25 = vst.msk [vmem:[#allocation2 + $0x18] sm:$0x7] %vm18, 0
  %26 = vst.msk [vmem:[#allocation2 + $0x1c] sm:$0x7] %vm18, 0
  %27 = vst.msk [vmem:[#allocation2 + $0x20] sm:$0x7] %vm18, 0
  %28 = vst.msk [vmem:[#allocation2 + $0x24] sm:$0x7] %vm18, 0
  %29 = vst.msk [vmem:[#allocation2 + $0x28] sm:$0x7] %vm18, 0
  %30 = vst.msk [vmem:[#allocation2 + $0x2c] sm:$0x7] %vm18, 0
  %v31 = vld [vmem:[%s0] sm:$0xf]
  %v32 = vld [vmem:[%s0 + $0x4] sm:$0xf]
  %v33 = vld [vmem:[%s0 + $0x8] sm:$0xf]
  %v34 = vld [vmem:[%s0 + $0xc] sm:$0xf]
  %v35 = vld [vmem:[%s0 + $0x10] sm:$0xf]
  %v36 = vld [vmem:[%s0 + $0x14] sm:$0xf]
  %v37 = vld [vmem:[%s0 + $0x18] sm:$0xf]
  %v38 = vld [vmem:[%s0 + $0x1c] sm:$0xf]
  %v39 = vpack.c.bf16 %v31, %v31
  %v40 = vpack.c.bf16 %v32, %v32
  %v41 = vpack.c.bf16 %v33, %v33
  %v42 = vpack.c.bf16 %v34, %v34
  %v43 = vpack.c.bf16 %v35, %v35
  %v44 = vpack.c.bf16 %v36, %v36
  %v45 = vpack.c.bf16 %v37, %v37
  %v46 = vpack.c.bf16 %v38, %v38
  %v48 = vshrl.u32 %v39, 16
  %v50 = vrot.slane %v48, 7
  %v51 = vshll.u32 %v39, 16
  %v53 = vor.u32 %v50, %v51
  %v55 = vshrl.u32 %v40, 16
  %v57 = vrot.slane %v55, 7
  %v58 = vshll.u32 %v40, 16
  %v60 = vor.u32 %v57, %v58
  %v62 = vshrl.u32 %v41, 16
  %v64 = vrot.slane %v62, 7
  %v65 = vshll.u32 %v41, 16
  %v67 = vor.u32 %v64, %v65
  %v69 = vshrl.u32 %v42, 16
  %v71 = vrot.slane %v69, 7
  %v72 = vshll.u32 %v42, 16
  %v74 = vor.u32 %v71, %v72
  %v76 = vshrl.u32 %v43, 16
  %v78 = vrot.slane %v76, 7
  %v79 = vshll.u32 %v43, 16
  %v81 = vor.u32 %v78, %v79
  %v83 = vshrl.u32 %v44, 16
  %v85 = vrot.slane %v83, 7
  %v86 = vshll.u32 %v44, 16
  %v88 = vor.u32 %v85, %v86
  %v90 = vshrl.u32 %v45, 16
  %v92 = vrot.slane %v90, 7
  %v93 = vshll.u32 %v45, 16
  %v95 = vor.u32 %v92, %v93
  %v97 = vshrl.u32 %v46, 16
  %v99 = vrot.slane %v97, 7
  %v100 = vshll.u32 %v46, 16
  %v102 = vor.u32 %v99, %v100
  %s111 = scalar_lea.vmem [#allocation2], 4
  %vm112 = vcmask 256000
  %vm113 = vsmask.f32 2306
  %vm114 = vmand %vm112, %vm113
  %v115 = vld [vmem:[%s111] sm:$0x7]
  %v116 = vsel %vm114, %v53, %v115
  %117 = vst [vmem:[%s111] sm:$0x7] %v116
  %v118 = vld [vmem:[%s111 + $0x4] sm:$0x7]
  %v119 = vsel %vm114, %v60, %v118
  %120 = vst [vmem:[%s111 + $0x4] sm:$0x7] %v119
  %v121 = vld [vmem:[%s111 + $0x8] sm:$0x7]
  %v122 = vsel %vm114, %v67, %v121
  %123 = vst [vmem:[%s111 + $0x8] sm:$0x7] %v122
  %v124 = vld [vmem:[%s111 + $0xc] sm:$0x7]
  %v125 = vsel %vm114, %v74, %v124
  %126 = vst [vmem:[%s111 + $0xc] sm:$0x7] %v125
  %v127 = vld [vmem:[%s111 + $0x18] sm:$0x7]
  %v128 = vsel %vm114, %v81, %v127
  %129 = vst [vmem:[%s111 + $0x18] sm:$0x7] %v128
  %v130 = vld [vmem:[%s111 + $0x1c] sm:$0x7]
  %v131 = vsel %vm114, %v88, %v130
  %132 = vst [vmem:[%s111 + $0x1c] sm:$0x7] %v131
  %v133 = vld [vmem:[%s111 + $0x20] sm:$0x7]
  %v134 = vsel %vm114, %v95, %v133
  %135 = vst [vmem:[%s111 + $0x20] sm:$0x7] %v134
  %v136 = vld [vmem:[%s111 + $0x24] sm:$0x7]
  %v137 = vsel %vm114, %v102, %v136
  %138 = vst [vmem:[%s111 + $0x24] sm:$0x7] %v137
  %v139 = vld [vmem:[#allocation2] sm:$0x3]
  %v140 = vld [vmem:[#allocation2 + $0x4] sm:$0x3]
  %v141 = vld [vmem:[#allocation2 + $0x8] sm:$0x3]
  %v142 = vld [vmem:[#allocation2 + $0xc] sm:$0x3]
  %v143 = vld [vmem:[#allocation2 + $0x18] sm:$0x3]
  %v144 = vld [vmem:[#allocation2 + $0x1c] sm:$0x3]
  %v145 = vld [vmem:[#allocation2 + $0x20] sm:$0x3]
  %v146 = vld [vmem:[#allocation2 + $0x24] sm:$0x3]
  %v147 = vld [vmem:[#allocation2] sm:$0x7]
  %v148 = vld [vmem:[#allocation2 + $0x4] sm:$0x7]
  %v149 = vld [vmem:[#allocation2 + $0x8] sm:$0x7]
  %v150 = vld [vmem:[#allocation2 + $0xc] sm:$0x7]
  %v151 = vld [vmem:[#allocation2 + $0x18] sm:$0x7]
  %v152 = vld [vmem:[#allocation2 + $0x1c] sm:$0x7]
  %v153 = vld [vmem:[#allocation2 + $0x20] sm:$0x7]
  %v154 = vld [vmem:[#allocation2 + $0x24] sm:$0x7]
  %v155 = vld [vmem:[#allocation2] sm:$0x6]
  %v156 = vld [vmem:[#allocation2 + $0x4] sm:$0x6]
  %v157 = vld [vmem:[#allocation2 + $0x8] sm:$0x6]
  %v158 = vld [vmem:[#allocation2 + $0xc] sm:$0x6]
  %v159 = vld [vmem:[#allocation2 + $0x18] sm:$0x6]
  %v160 = vld [vmem:[#allocation2 + $0x1c] sm:$0x6]
  %v161 = vld [vmem:[#allocation2 + $0x20] sm:$0x6]
  %v162 = vld [vmem:[#allocation2 + $0x24] sm:$0x6]
  %v163 = vld [vmem:[%s111] sm:$0x3]
  %v164 = vld [vmem:[%s111 + $0x4] sm:$0x3]
  %v165 = vld [vmem:[%s111 + $0x8] sm:$0x3]
  %v166 = vld [vmem:[%s111 + $0xc] sm:$0x3]
  %v167 = vld [vmem:[%s111 + $0x18] sm:$0x3]
  %v168 = vld [vmem:[%s111 + $0x1c] sm:$0x3]
  %v169 = vld [vmem:[%s111 + $0x20] sm:$0x3]
  %v170 = vld [vmem:[%s111 + $0x24] sm:$0x3]
  %v171 = vld [vmem:[%s111] sm:$0x7]
  %v172 = vld [vmem:[%s111 + $0x4] sm:$0x7]
  %v173 = vld [vmem:[%s111 + $0x8] sm:$0x7]
  %v174 = vld [vmem:[%s111 + $0xc] sm:$0x7]
  %v175 = vld [vmem:[%s111 + $0x18] sm:$0x7]
  %v176 = vld [vmem:[%s111 + $0x1c] sm:$0x7]
  %v177 = vld [vmem:[%s111 + $0x20] sm:$0x7]
  %v178 = vld [vmem:[%s111 + $0x24] sm:$0x7]
  %v179 = vld [vmem:[%s111] sm:$0x6]
  %v180 = vld [vmem:[%s111 + $0x4] sm:$0x6]
  %v181 = vld [vmem:[%s111 + $0x8] sm:$0x6]
  %v182 = vld [vmem:[%s111 + $0xc] sm:$0x6]
  %v183 = vld [vmem:[%s111 + $0x18] sm:$0x6]
  %v184 = vld [vmem:[%s111 + $0x1c] sm:$0x6]
  %v185 = vld [vmem:[%s111 + $0x20] sm:$0x6]
  %v186 = vld [vmem:[%s111 + $0x24] sm:$0x6]
  %s187 = scalar_lea.vmem [#allocation2], 8
  %v188 = vld [vmem:[%s187] sm:$0x3]
  %v189 = vld [vmem:[%s187 + $0x4] sm:$0x3]
  %v190 = vld [vmem:[%s187 + $0x8] sm:$0x3]
  %v191 = vld [vmem:[%s187 + $0xc] sm:$0x3]
  %v192 = vld [vmem:[%s187 + $0x18] sm:$0x3]
  %v193 = vld [vmem:[%s187 + $0x1c] sm:$0x3]
  %v194 = vld [vmem:[%s187 + $0x20] sm:$0x3]
  %v195 = vld [vmem:[%s187 + $0x24] sm:$0x3]
  %v196 = vld [vmem:[%s187] sm:$0x7]
  %v197 = vld [vmem:[%s187 + $0x4] sm:$0x7]
  %v198 = vld [vmem:[%s187 + $0x8] sm:$0x7]
  %v199 = vld [vmem:[%s187 + $0xc] sm:$0x7]
  %v200 = vld [vmem:[%s187 + $0x18] sm:$0x7]
  %v201 = vld [vmem:[%s187 + $0x1c] sm:$0x7]
  %v202 = vld [vmem:[%s187 + $0x20] sm:$0x7]
  %v203 = vld [vmem:[%s187 + $0x24] sm:$0x7]
  %v204 = vld [vmem:[%s187] sm:$0x6]
  %v205 = vld [vmem:[%s187 + $0x4] sm:$0x6]
  %v206 = vld [vmem:[%s187 + $0x8] sm:$0x6]
  %v207 = vld [vmem:[%s187 + $0xc] sm:$0x6]
  %v208 = vld [vmem:[%s187 + $0x18] sm:$0x6]
  %v209 = vld [vmem:[%s187 + $0x1c] sm:$0x6]
  %v210 = vld [vmem:[%s187 + $0x20] sm:$0x6]
  %v211 = vld [vmem:[%s187 + $0x24] sm:$0x6]
  %v220 = vunpack.c.l.b16 %v147
  %v221 = vunpack.c.l.b16 %v148
  %v222 = vunpack.c.l.b16 %v149
  %v223 = vunpack.c.l.b16 %v150
  %v224 = vunpack.c.l.b16 %v151
  %v225 = vunpack.c.l.b16 %v152
  %v226 = vunpack.c.l.b16 %v153
  %v227 = vunpack.c.l.b16 %v154
  %v228 = vpack.c.b16 %v220, %v220
  %v229 = vpack.c.b16 %v221, %v221
  %v230 = vpack.c.b16 %v222, %v222
  %v231 = vpack.c.b16 %v223, %v223
  %v232 = vpack.c.b16 %v224, %v224
  %v233 = vpack.c.b16 %v225, %v225
  %v234 = vpack.c.b16 %v226, %v226
  %v235 = vpack.c.b16 %v227, %v227
  %v237 = vshrl.u32 %v228, 16
  %v239 = vshll.u32 %v228, 16
  %v241 = vrot.slane %v239, 1
  %v242 = vor.u32 %v237, %v241
  %v244 = vshrl.u32 %v229, 16
  %v246 = vshll.u32 %v229, 16
  %v248 = vrot.slane %v246, 1
  %v249 = vor.u32 %v244, %v248
  %v251 = vshrl.u32 %v230, 16
  %v253 = vshll.u32 %v230, 16
  %v255 = vrot.slane %v253, 1
  %v256 = vor.u32 %v251, %v255
  %v258 = vshrl.u32 %v231, 16
  %v260 = vshll.u32 %v231, 16
  %v262 = vrot.slane %v260, 1
  %v263 = vor.u32 %v258, %v262
  %v265 = vshrl.u32 %v232, 16
  %v267 = vshll.u32 %v232, 16
  %v269 = vrot.slane %v267, 1
  %v270 = vor.u32 %v265, %v269
  %v272 = vshrl.u32 %v233, 16
  %v274 = vshll.u32 %v233, 16
  %v276 = vrot.slane %v274, 1
  %v277 = vor.u32 %v272, %v276
  %v279 = vshrl.u32 %v234, 16
  %v281 = vshll.u32 %v234, 16
  %v283 = vrot.slane %v281, 1
  %v284 = vor.u32 %v279, %v283
  %v286 = vshrl.u32 %v235, 16
  %v288 = vshll.u32 %v235, 16
  %v290 = vrot.slane %v288, 1
  %v291 = vor.u32 %v286, %v290
  %292 = vrot.lane.b32.xlu0 %v242, 32
  %v293 = vpop.permute.xlu0 %292
  %294 = vrot.lane.b32.xlu0 %v249, 32
  %v295 = vpop.permute.xlu0 %294
  %296 = vrot.lane.b32.xlu0 %v256, 32
  %v297 = vpop.permute.xlu0 %296
  %298 = vrot.lane.b32.xlu0 %v263, 32
  %v299 = vpop.permute.xlu0 %298
  %300 = vrot.lane.b32.xlu0 %v270, 32
  %v301 = vpop.permute.xlu0 %300
  %302 = vrot.lane.b32.xlu0 %v277, 32
  %v303 = vpop.permute.xlu0 %302
  %304 = vrot.lane.b32.xlu0 %v284, 32
  %v305 = vpop.permute.xlu0 %304
  %306 = vrot.lane.b32.xlu0 %v291, 32
  %v307 = vpop.permute.xlu0 %306
  %v316 = vunpack.c.l.b16 %v155
  %v317 = vunpack.c.l.b16 %v156
  %v318 = vunpack.c.l.b16 %v157
  %v319 = vunpack.c.l.b16 %v158
  %v320 = vunpack.c.l.b16 %v159
  %v321 = vunpack.c.l.b16 %v160
  %v322 = vunpack.c.l.b16 %v161
  %v323 = vunpack.c.l.b16 %v162
  %v324 = vpack.c.b16 %v316, %v316
  %v325 = vpack.c.b16 %v317, %v317
  %v326 = vpack.c.b16 %v318, %v318
  %v327 = vpack.c.b16 %v319, %v319
  %v328 = vpack.c.b16 %v320, %v320
  %v329 = vpack.c.b16 %v321, %v321
  %v330 = vpack.c.b16 %v322, %v322
  %v331 = vpack.c.b16 %v323, %v323
  %v332 = vrot.slane %v324, 1
  %v333 = vrot.slane %v325, 1
  %v334 = vrot.slane %v326, 1
  %v335 = vrot.slane %v327, 1
  %v336 = vrot.slane %v328, 1
  %v337 = vrot.slane %v329, 1
  %v338 = vrot.slane %v330, 1
  %v339 = vrot.slane %v331, 1
  %340 = vrot.lane.b32.xlu0 %v332, 64
  %v341 = vpop.permute.xlu0 %340
  %342 = vrot.lane.b32.xlu0 %v333, 64
  %v343 = vpop.permute.xlu0 %342
  %344 = vrot.lane.b32.xlu0 %v334, 64
  %v345 = vpop.permute.xlu0 %344
  %346 = vrot.lane.b32.xlu0 %v335, 64
  %v347 = vpop.permute.xlu0 %346
  %348 = vrot.lane.b32.xlu0 %v336, 64
  %v349 = vpop.permute.xlu0 %348
  %350 = vrot.lane.b32.xlu0 %v337, 64
  %v351 = vpop.permute.xlu0 %350
  %352 = vrot.lane.b32.xlu0 %v338, 64
  %v353 = vpop.permute.xlu0 %352
  %354 = vrot.lane.b32.xlu0 %v339, 64
  %v355 = vpop.permute.xlu0 %354
  %v364 = vunpack.c.l.b16 %v163
  %v365 = vunpack.c.l.b16 %v164
  %v366 = vunpack.c.l.b16 %v165
  %v367 = vunpack.c.l.b16 %v166
  %v368 = vunpack.c.l.b16 %v167
  %v369 = vunpack.c.l.b16 %v168
  %v370 = vunpack.c.l.b16 %v169
  %v371 = vunpack.c.l.b16 %v170
  %v372 = vpack.c.b16 %v364, %v364
  %v373 = vpack.c.b16 %v365, %v365
  %v374 = vpack.c.b16 %v366, %v366
  %v375 = vpack.c.b16 %v367, %v367
  %v376 = vpack.c.b16 %v368, %v368
  %v377 = vpack.c.b16 %v369, %v369
  %v378 = vpack.c.b16 %v370, %v370
  %v379 = vpack.c.b16 %v371, %v371
  %380 = vrot.lane.b32.xlu0 %v372, 96
  %v381 = vpop.permute.xlu0 %380
  %382 = vrot.lane.b32.xlu0 %v373, 96
  %v383 = vpop.permute.xlu0 %382
  %384 = vrot.lane.b32.xlu0 %v374, 96
  %v385 = vpop.permute.xlu0 %384
  %386 = vrot.lane.b32.xlu0 %v375, 96
  %v387 = vpop.permute.xlu0 %386
  %388 = vrot.lane.b32.xlu0 %v376, 96
  %v389 = vpop.permute.xlu0 %388
  %390 = vrot.lane.b32.xlu0 %v377, 96
  %v391 = vpop.permute.xlu0 %390
  %392 = vrot.lane.b32.xlu0 %v378, 96
  %v393 = vpop.permute.xlu0 %392
  %394 = vrot.lane.b32.xlu0 %v379, 96
  %v395 = vpop.permute.xlu0 %394
  %v404 = vunpack.c.l.b16 %v171
  %v405 = vunpack.c.l.b16 %v172
  %v406 = vunpack.c.l.b16 %v173
  %v407 = vunpack.c.l.b16 %v174
  %v408 = vunpack.c.l.b16 %v175
  %v409 = vunpack.c.l.b16 %v176
  %v410 = vunpack.c.l.b16 %v177
  %v411 = vunpack.c.l.b16 %v178
  %v412 = vpack.c.b16 %v404, %v404
  %v413 = vpack.c.b16 %v405, %v405
  %v414 = vpack.c.b16 %v406, %v406
  %v415 = vpack.c.b16 %v407, %v407
  %v416 = vpack.c.b16 %v408, %v408
  %v417 = vpack.c.b16 %v409, %v409
  %v418 = vpack.c.b16 %v410, %v410
  %v419 = vpack.c.b16 %v411, %v411
  %v421 = vshrl.u32 %v412, 16
  %v423 = vshll.u32 %v412, 16
  %v425 = vrot.slane %v423, 1
  %v426 = vor.u32 %v421, %v425
  %v428 = vshrl.u32 %v413, 16
  %v430 = vshll.u32 %v413, 16
  %v432 = vrot.slane %v430, 1
  %v433 = vor.u32 %v428, %v432
  %v435 = vshrl.u32 %v414, 16
  %v437 = vshll.u32 %v414, 16
  %v439 = vrot.slane %v437, 1
  %v440 = vor.u32 %v435, %v439
  %v442 = vshrl.u32 %v415, 16
  %v444 = vshll.u32 %v415, 16
  %v446 = vrot.slane %v444, 1
  %v447 = vor.u32 %v442, %v446
  %v449 = vshrl.u32 %v416, 16
  %v451 = vshll.u32 %v416, 16
  %v453 = vrot.slane %v451, 1
  %v454 = vor.u32 %v449, %v453
  %v456 = vshrl.u32 %v417, 16
  %v458 = vshll.u32 %v417, 16
  %v460 = vrot.slane %v458, 1
  %v461 = vor.u32 %v456, %v460
  %v463 = vshrl.u32 %v418, 16
  %v465 = vshll.u32 %v418, 16
  %v467 = vrot.slane %v465, 1
  %v468 = vor.u32 %v463, %v467
  %v470 = vshrl.u32 %v419, 16
  %v472 = vshll.u32 %v419, 16
  %v474 = vrot.slane %v472, 1
  %v475 = vor.u32 %v470, %v474
  %v484 = vunpack.c.l.b16 %v179
  %v485 = vunpack.c.l.b16 %v180
  %v486 = vunpack.c.l.b16 %v181
  %v487 = vunpack.c.l.b16 %v182
  %v488 = vunpack.c.l.b16 %v183
  %v489 = vunpack.c.l.b16 %v184
  %v490 = vunpack.c.l.b16 %v185
  %v491 = vunpack.c.l.b16 %v186
  %v492 = vpack.c.b16 %v484, %v484
  %v493 = vpack.c.b16 %v485, %v485
  %v494 = vpack.c.b16 %v486, %v486
  %v495 = vpack.c.b16 %v487, %v487
  %v496 = vpack.c.b16 %v488, %v488
  %v497 = vpack.c.b16 %v489, %v489
  %v498 = vpack.c.b16 %v490, %v490
  %v499 = vpack.c.b16 %v491, %v491
  %v500 = vrot.slane %v492, 1
  %v501 = vrot.slane %v493, 1
  %v502 = vrot.slane %v494, 1
  %v503 = vrot.slane %v495, 1
  %v504 = vrot.slane %v496, 1
  %v505 = vrot.slane %v497, 1
  %v506 = vrot.slane %v498, 1
  %v507 = vrot.slane %v499, 1
  %508 = vrot.lane.b32.xlu0 %v500, 32
  %v509 = vpop.permute.xlu0 %508
  %510 = vrot.lane.b32.xlu0 %v501, 32
  %v511 = vpop.permute.xlu0 %510
  %512 = vrot.lane.b32.xlu0 %v502, 32
  %v513 = vpop.permute.xlu0 %512
  %514 = vrot.lane.b32.xlu0 %v503, 32
  %v515 = vpop.permute.xlu0 %514
  %516 = vrot.lane.b32.xlu0 %v504, 32
  %v517 = vpop.permute.xlu0 %516
  %518 = vrot.lane.b32.xlu0 %v505, 32
  %v519 = vpop.permute.xlu0 %518
  %520 = vrot.lane.b32.xlu0 %v506, 32
  %v521 = vpop.permute.xlu0 %520
  %522 = vrot.lane.b32.xlu0 %v507, 32
  %v523 = vpop.permute.xlu0 %522
  %v532 = vunpack.c.l.b16 %v188
  %v533 = vunpack.c.l.b16 %v189
  %v534 = vunpack.c.l.b16 %v190
  %v535 = vunpack.c.l.b16 %v191
  %v536 = vunpack.c.l.b16 %v192
  %v537 = vunpack.c.l.b16 %v193
  %v538 = vunpack.c.l.b16 %v194
  %v539 = vunpack.c.l.b16 %v195
  %v540 = vpack.c.b16 %v532, %v532
  %v541 = vpack.c.b16 %v533, %v533
  %v542 = vpack.c.b16 %v534, %v534
  %v543 = vpack.c.b16 %v535, %v535
  %v544 = vpack.c.b16 %v536, %v536
  %v545 = vpack.c.b16 %v537, %v537
  %v546 = vpack.c.b16 %v538, %v538
  %v547 = vpack.c.b16 %v539, %v539
  %548 = vrot.lane.b32.xlu0 %v540, 64
  %v549 = vpop.permute.xlu0 %548
  %550 = vrot.lane.b32.xlu0 %v541, 64
  %v551 = vpop.permute.xlu0 %550
  %552 = vrot.lane.b32.xlu0 %v542, 64
  %v553 = vpop.permute.xlu0 %552
  %554 = vrot.lane.b32.xlu0 %v543, 64
  %v555 = vpop.permute.xlu0 %554
  %556 = vrot.lane.b32.xlu0 %v544, 64
  %v557 = vpop.permute.xlu0 %556
  %558 = vrot.lane.b32.xlu0 %v545, 64
  %v559 = vpop.permute.xlu0 %558
  %560 = vrot.lane.b32.xlu0 %v546, 64
  %v561 = vpop.permute.xlu0 %560
  %562 = vrot.lane.b32.xlu0 %v547, 64
  %v563 = vpop.permute.xlu0 %562
  %v572 = vunpack.c.l.b16 %v196
  %v573 = vunpack.c.l.b16 %v197
  %v574 = vunpack.c.l.b16 %v198
  %v575 = vunpack.c.l.b16 %v199
  %v576 = vunpack.c.l.b16 %v200
  %v577 = vunpack.c.l.b16 %v201
  %v578 = vunpack.c.l.b16 %v202
  %v579 = vunpack.c.l.b16 %v203
  %v580 = vpack.c.b16 %v572, %v572
  %v581 = vpack.c.b16 %v573, %v573
  %v582 = vpack.c.b16 %v574, %v574
  %v583 = vpack.c.b16 %v575, %v575
  %v584 = vpack.c.b16 %v576, %v576
  %v585 = vpack.c.b16 %v577, %v577
  %v586 = vpack.c.b16 %v578, %v578
  %v587 = vpack.c.b16 %v579, %v579
  %v589 = vshrl.u32 %v580, 16
  %v591 = vshll.u32 %v580, 16
  %v593 = vrot.slane %v591, 1
  %v594 = vor.u32 %v589, %v593
  %v596 = vshrl.u32 %v581, 16
  %v598 = vshll.u32 %v581, 16
  %v600 = vrot.slane %v598, 1
  %v601 = vor.u32 %v596, %v600
  %v603 = vshrl.u32 %v582, 16
  %v605 = vshll.u32 %v582, 16
  %v607 = vrot.slane %v605, 1
  %v608 = vor.u32 %v603, %v607
  %v610 = vshrl.u32 %v583, 16
  %v612 = vshll.u32 %v583, 16
  %v614 = vrot.slane %v612, 1
  %v615 = vor.u32 %v610, %v614
  %v617 = vshrl.u32 %v584, 16
  %v619 = vshll.u32 %v584, 16
  %v621 = vrot.slane %v619, 1
  %v622 = vor.u32 %v617, %v621
  %v624 = vshrl.u32 %v585, 16
  %v626 = vshll.u32 %v585, 16
  %v628 = vrot.slane %v626, 1
  %v629 = vor.u32 %v624, %v628
  %v631 = vshrl.u32 %v586, 16
  %v633 = vshll.u32 %v586, 16
  %v635 = vrot.slane %v633, 1
  %v636 = vor.u32 %v631, %v635
  %v638 = vshrl.u32 %v587, 16
  %v640 = vshll.u32 %v587, 16
  %v642 = vrot.slane %v640, 1
  %v643 = vor.u32 %v638, %v642
  %644 = vrot.lane.b32.xlu0 %v594, 96
  %v645 = vpop.permute.xlu0 %644
  %646 = vrot.lane.b32.xlu0 %v601, 96
  %v647 = vpop.permute.xlu0 %646
  %648 = vrot.lane.b32.xlu0 %v608, 96
  %v649 = vpop.permute.xlu0 %648
  %650 = vrot.lane.b32.xlu0 %v615, 96
  %v651 = vpop.permute.xlu0 %650
  %652 = vrot.lane.b32.xlu0 %v622, 96
  %v653 = vpop.permute.xlu0 %652
  %654 = vrot.lane.b32.xlu0 %v629, 96
  %v655 = vpop.permute.xlu0 %654
  %656 = vrot.lane.b32.xlu0 %v636, 96
  %v657 = vpop.permute.xlu0 %656
  %658 = vrot.lane.b32.xlu0 %v643, 96
  %v659 = vpop.permute.xlu0 %658
  %v668 = vunpack.c.l.b16 %v204
  %v669 = vunpack.c.l.b16 %v205
  %v670 = vunpack.c.l.b16 %v206
  %v671 = vunpack.c.l.b16 %v207
  %v672 = vunpack.c.l.b16 %v208
  %v673 = vunpack.c.l.b16 %v209
  %v674 = vunpack.c.l.b16 %v210
  %v675 = vunpack.c.l.b16 %v211
  %v676 = vpack.c.b16 %v668, %v668
  %v677 = vpack.c.b16 %v669, %v669
  %v678 = vpack.c.b16 %v670, %v670
  %v679 = vpack.c.b16 %v671, %v671
  %v680 = vpack.c.b16 %v672, %v672
  %v681 = vpack.c.b16 %v673, %v673
  %v682 = vpack.c.b16 %v674, %v674
  %v683 = vpack.c.b16 %v675, %v675
  %v684 = vrot.slane %v676, 1
  %v685 = vrot.slane %v677, 1
  %v686 = vrot.slane %v678, 1
  %v687 = vrot.slane %v679, 1
  %v688 = vrot.slane %v680, 1
  %v689 = vrot.slane %v681, 1
  %v690 = vrot.slane %v682, 1
  %v691 = vrot.slane %v683, 1
  %vm692 = vcmask 261120
  %v695 = vsel %vm692, %v139, %v293
  %v698 = vsel %vm692, %v140, %v295
  %v701 = vsel %vm692, %v141, %v297
  %v704 = vsel %vm692, %v142, %v299
  %v707 = vsel %vm692, %v143, %v301
  %v710 = vsel %vm692, %v144, %v303
  %v713 = vsel %vm692, %v145, %v305
  %v716 = vsel %vm692, %v146, %v307
  %vm717 = vcmask 523264
  %v719 = vsel %vm717, %v695, %v341
  %v721 = vsel %vm717, %v698, %v343
  %v723 = vsel %vm717, %v701, %v345
  %v725 = vsel %vm717, %v704, %v347
  %v727 = vsel %vm717, %v707, %v349
  %v729 = vsel %vm717, %v710, %v351
  %v731 = vsel %vm717, %v713, %v353
  %v733 = vsel %vm717, %v716, %v355
  %vm734 = vcmask 785408
  %v736 = vsel %vm734, %v719, %v381
  %v738 = vsel %vm734, %v721, %v383
  %v740 = vsel %vm734, %v723, %v385
  %v742 = vsel %vm734, %v725, %v387
  %v744 = vsel %vm734, %v727, %v389
  %v746 = vsel %vm734, %v729, %v391
  %v748 = vsel %vm734, %v731, %v393
  %v750 = vsel %vm734, %v733, %v395
  %v753 = vsel %vm692, %v426, %v509
  %v756 = vsel %vm692, %v433, %v511
  %v759 = vsel %vm692, %v440, %v513
  %v762 = vsel %vm692, %v447, %v515
  %v765 = vsel %vm692, %v454, %v517
  %v768 = vsel %vm692, %v461, %v519
  %v771 = vsel %vm692, %v468, %v521
  %v774 = vsel %vm692, %v475, %v523
  %v776 = vsel %vm717, %v753, %v549
  %v778 = vsel %vm717, %v756, %v551
  %v780 = vsel %vm717, %v759, %v553
  %v782 = vsel %vm717, %v762, %v555
  %v784 = vsel %vm717, %v765, %v557
  %v786 = vsel %vm717, %v768, %v559
  %v788 = vsel %vm717, %v771, %v561
  %v790 = vsel %vm717, %v774, %v563
  %v792 = vsel %vm734, %v776, %v645
  %v794 = vsel %vm734, %v778, %v647
  %v796 = vsel %vm734, %v780, %v649
  %v798 = vsel %vm734, %v782, %v651
  %v800 = vsel %vm734, %v784, %v653
  %v802 = vsel %vm734, %v786, %v655
  %v804 = vsel %vm734, %v788, %v657
  %v806 = vsel %vm734, %v790, %v659
  %v815 = vrot.slane %v792, 6
  %v816 = vrot.slane %v684, 4
  %v817 = vrot.slane %v794, 6
  %v818 = vrot.slane %v685, 4
  %v819 = vrot.slane %v796, 6
  %v820 = vrot.slane %v686, 4
  %v821 = vrot.slane %v798, 6
  %v822 = vrot.slane %v687, 4
  %v823 = vrot.slane %v800, 6
  %v824 = vrot.slane %v688, 4
  %v825 = vrot.slane %v802, 6
  %v826 = vrot.slane %v689, 4
  %v827 = vrot.slane %v804, 6
  %v828 = vrot.slane %v690, 4
  %v829 = vrot.slane %v806, 6
  %v830 = vrot.slane %v691, 4
  %vm831 = vcmask 1041408
  %v833 = vsel %vm831, %v736, %v815
  %vm834 = vcmask 1043456
  %v836 = vsel %vm834, %v833, %v816
  %v838 = vsel %vm831, %v738, %v817
  %v840 = vsel %vm834, %v838, %v818
  %v842 = vsel %vm831, %v740, %v819
  %v844 = vsel %vm834, %v842, %v820
  %v846 = vsel %vm831, %v742, %v821
  %v848 = vsel %vm834, %v846, %v822
  %v850 = vsel %vm831, %v744, %v823
  %v852 = vsel %vm834, %v850, %v824
  %v854 = vsel %vm831, %v746, %v825
  %v856 = vsel %vm834, %v854, %v826
  %v858 = vsel %vm831, %v748, %v827
  %v860 = vsel %vm834, %v858, %v828
  %v862 = vsel %vm831, %v750, %v829
  %v864 = vsel %vm834, %v862, %v830
  %v865 = vld [vmem:[%s1] sm:$0xf]
  %v866 = vld [vmem:[%s1 + $0x4] sm:$0xf]
  %v867 = vld [vmem:[%s1 + $0x8] sm:$0xf]
  %v868 = vld [vmem:[%s1 + $0xc] sm:$0xf]
  %v869 = vld [vmem:[%s1 + $0x10] sm:$0xf]
  %v870 = vld [vmem:[%s1 + $0x14] sm:$0xf]
  %v871 = vld [vmem:[%s1 + $0x18] sm:$0xf]
  %v872 = vld [vmem:[%s1 + $0x1c] sm:$0xf]
  %v873 = vld [vmem:[%s1 + $0x20] sm:$0xf]
  %v874 = vld [vmem:[%s1 + $0x24] sm:$0xf]
  %v875 = vld [vmem:[%s1 + $0x28] sm:$0xf]
  %v876 = vld [vmem:[%s1 + $0x2c] sm:$0xf]
  %v877 = vld [vmem:[%s1 + $0x30] sm:$0xf]
  %v878 = vld [vmem:[%s1 + $0x34] sm:$0xf]
  %v879 = vld [vmem:[%s1 + $0x38] sm:$0xf]
  %v880 = vld [vmem:[%s1 + $0x3c] sm:$0xf]
  %v881 = vld [vmem:[%s1 + $0x40] sm:$0xf]
  %v882 = vld [vmem:[%s1 + $0x44] sm:$0xf]
  %v883 = vld [vmem:[%s1 + $0x48] sm:$0xf]
  %v884 = vld [vmem:[%s1 + $0x4c] sm:$0xf]
  %v885 = vld [vmem:[%s1 + $0x50] sm:$0xf]
  %v886 = vld [vmem:[%s1 + $0x54] sm:$0xf]
  %v887 = vld [vmem:[%s1 + $0x58] sm:$0xf]
  %v888 = vld [vmem:[%s1 + $0x5c] sm:$0xf]
  %v889 = vld [vmem:[%s1 + $0x60] sm:$0xf]
  %v890 = vld [vmem:[%s1 + $0x64] sm:$0xf]
  %v891 = vld [vmem:[%s1 + $0x68] sm:$0xf]
  %v892 = vld [vmem:[%s1 + $0x6c] sm:$0xf]
  %v893 = vld [vmem:[%s1 + $0x70] sm:$0xf]
  %v894 = vld [vmem:[%s1 + $0x74] sm:$0xf]
  %v895 = vld [vmem:[%s1 + $0x78] sm:$0xf]
  %v896 = vld [vmem:[%s1 + $0x7c] sm:$0xf]
  %v897 = vld [vmem:[%s1 + $0x80] sm:$0xf]
  %v898 = vld [vmem:[%s1 + $0x84] sm:$0xf]
  %v899 = vld [vmem:[%s1 + $0x88] sm:$0xf]
  %v900 = vld [vmem:[%s1 + $0x8c] sm:$0xf]
  %v901 = vld [vmem:[%s2] sm:$0x1]
  %v903 = vperm.slane %v901, 0
  %905 = vst [vmem:[#allocation1] ss:$4 sm:$0xff] %v836
  %s906 = scalar_lea.vmem [#allocation1], 1
  %907 = vst [vmem:[%s906] ss:$4 sm:$0xff] %v840
  %s908 = scalar_lea.vmem [#allocation1], 2
  %909 = vst [vmem:[%s908] ss:$4 sm:$0xff] %v844
  %s910 = scalar_lea.vmem [#allocation1], 3
  %911 = vst [vmem:[%s910] ss:$4 sm:$0xff] %v848
  %s912 = scalar_lea.vmem [#allocation1], 32
  %913 = vst [vmem:[%s912] ss:$4 sm:$0xff] %v852
  %s914 = scalar_lea.vmem [#allocation1], 33
  %915 = vst [vmem:[%s914] ss:$4 sm:$0xff] %v856
  %s916 = scalar_lea.vmem [#allocation1], 34
  %917 = vst [vmem:[%s916] ss:$4 sm:$0xff] %v860
  %s918 = scalar_lea.vmem [#allocation1], 35
  %919 = vst [vmem:[%s918] ss:$4 sm:$0xff] %v864
  %v920 = vld.sshfl [vmem:[#allocation1] sm:$0xff pattern:$0x73625140]
  %v921 = vld.sshfl [vmem:[#allocation1 + $0x8] sm:$0xff pattern:$0x73625140]
  %v922 = vld.sshfl [vmem:[#allocation1 + $0x10] sm:$0xff pattern:$0x73625140]
  %v923 = vld.sshfl [vmem:[#allocation1 + $0x20] sm:$0xff pattern:$0x73625140]
  %v924 = vld.sshfl [vmem:[#allocation1 + $0x28] sm:$0xff pattern:$0x73625140]
  %v925 = vld.sshfl [vmem:[#allocation1 + $0x30] sm:$0xff pattern:$0x73625140]
  %v966 = vunpack.c.l.b16 %v865
  %v967 = vunpack.c.l.b16 %v866
  %v968 = vunpack.c.l.b16 %v867
  %v969 = vunpack.c.l.b16 %v868
  %v970 = vunpack.c.l.b16 %v869
  %v971 = vunpack.c.l.b16 %v870
  %v972 = vunpack.c.l.b16 %v871
  %v973 = vunpack.c.l.b16 %v872
  %v974 = vunpack.c.l.b16 %v873
  %v975 = vunpack.c.l.b16 %v874
  %v976 = vunpack.c.l.b16 %v875
  %v977 = vunpack.c.l.b16 %v876
  %v978 = vunpack.c.l.b16 %v877
  %v979 = vunpack.c.l.b16 %v878
  %v980 = vunpack.c.l.b16 %v879
  %v981 = vunpack.c.l.b16 %v880
  %v982 = vunpack.c.l.b16 %v881
  %v983 = vunpack.c.l.b16 %v882
  %v984 = vunpack.c.l.b16 %v883
  %v985 = vunpack.c.l.b16 %v884
  %v986 = vunpack.c.l.b16 %v885
  %v987 = vunpack.c.l.b16 %v886
  %v988 = vunpack.c.l.b16 %v887
  %v989 = vunpack.c.l.b16 %v888
  %v990 = vunpack.c.l.b16 %v889
  %v991 = vunpack.c.l.b16 %v890
  %v992 = vunpack.c.l.b16 %v891
  %v993 = vunpack.c.l.b16 %v892
  %v994 = vunpack.c.l.b16 %v893
  %v995 = vunpack.c.l.b16 %v894
  %v996 = vunpack.c.l.b16 %v895
  %v997 = vunpack.c.l.b16 %v896
  %v998 = vunpack.c.l.b16 %v897
  %v999 = vunpack.c.l.b16 %v898
  %v1000 = vunpack.c.l.b16 %v899
  %v1001 = vunpack.c.l.b16 %v900
  %v1002 = vpack.c.b16 %v967, %v966
  %v1003 = vpack.c.b16 %v969, %v968
  %v1004 = vpack.c.b16 %v971, %v970
  %v1005 = vpack.c.b16 %v973, %v972
  %v1006 = vpack.c.b16 %v975, %v974
  %v1007 = vpack.c.b16 %v977, %v976
  %v1008 = vpack.c.b16 %v979, %v978
  %v1009 = vpack.c.b16 %v981, %v980
  %v1010 = vpack.c.b16 %v983, %v982
  %v1011 = vpack.c.b16 %v985, %v984
  %v1012 = vpack.c.b16 %v987, %v986
  %v1013 = vpack.c.b16 %v989, %v988
  %v1014 = vpack.c.b16 %v991, %v990
  %v1015 = vpack.c.b16 %v993, %v992
  %v1016 = vpack.c.b16 %v995, %v994
  %v1017 = vpack.c.b16 %v997, %v996
  %v1018 = vpack.c.b16 %v999, %v998
  %v1019 = vpack.c.b16 %v1001, %v1000
  %v1038 = vsel %vm692, %v922, 0
  %v1040 = vsel %vm692, %v925, 0
  %1042 = vmatpush.bf16.msra.mxu0 %v1009
  %1043 = vmatpush.bf16.msra.mxu0 %v1008
  %1044 = vmatpush.bf16.msra.mxu0 %v1007
  %1045 = vmatpush.bf16.msra.mxu0 %v1006
  %1046 = vmatpush.bf16.msra.mxu0 %v1005
  %1047 = vmatpush.bf16.msra.mxu0 %v1004
  %1048 = vmatpush.bf16.msra.mxu0 %v1003
  %1049 = vmatpush.bf16.msra.mxu0 %v1002
  %1050 = vmatmul.bf16.gmra.mxu0 %v920
  %v1051 = vpop.f32.mrf.mxu0
  %v1052 = vadd.f32 %v903, %v1051
  %v1053 = vpop.f32.mrf.mxu0
  %v1054 = vadd.f32 %v903, %v1053
  %1055 = vmatmul.bf16.gmra.mxu0 %v923
  %v1056 = vpop.f32.mrf.mxu0
  %v1057 = vadd.f32 %v903, %v1056
  %v1058 = vpop.f32.mrf.mxu0
  %v1059 = vadd.f32 %v903, %v1058
  %1060 = vdwg.mxu0
  %1061 = vmatpush.bf16.msra.mxu0 %v1017
  %1062 = vmatpush.bf16.msra.mxu0 %v1016
  %1063 = vmatpush.bf16.msra.mxu0 %v1015
  %1064 = vmatpush.bf16.msra.mxu0 %v1014
  %1065 = vmatpush.bf16.msra.mxu0 %v1013
  %1066 = vmatpush.bf16.msra.mxu0 %v1012
  %1067 = vmatpush.bf16.msra.mxu0 %v1011
  %1068 = vmatpush.bf16.msra.mxu0 %v1010
  %1069 = vmatmul.bf16.gmra.mxu0 %v921
  %v1070 = vpop.f32.mrf.mxu0
  %v1071 = vadd.f32 %v1052, %v1070
  %v1072 = vpop.f32.mrf.mxu0
  %v1073 = vadd.f32 %v1054, %v1072
  %1074 = vmatmul.bf16.gmra.mxu0 %v924
  %v1075 = vpop.f32.mrf.mxu0
  %v1076 = vadd.f32 %v1057, %v1075
  %v1077 = vpop.f32.mrf.mxu0
  %v1078 = vadd.f32 %v1059, %v1077
  %1079 = vdwg.mxu0
  %1080 = vmatpush.bf16.msra.mxu0 0
  %1081 = vmatpush.bf16.msra.mxu0 0
  %1082 = vmatpush.bf16.msra.mxu0 0
  %1083 = vmatpush.bf16.msra.mxu0 0
  %1084 = vmatpush.bf16.msra.mxu0 0
  %1085 = vmatpush.bf16.msra.mxu0 0
  %1086 = vmatpush.bf16.msra.mxu0 %v1019
  %1087 = vmatpush.bf16.msra.mxu0 %v1018
  %1088 = vmatmul.bf16.gmra.mxu0 %v1038
  %v1089 = vpop.f32.mrf.mxu0
  %v1090 = vadd.f32 %v1071, %v1089
  %v1091 = vpop.f32.mrf.mxu0
  %v1092 = vadd.f32 %v1073, %v1091
  %1093 = vmatmul.bf16.gmra.mxu0 %v1040
  %v1094 = vpop.f32.mrf.mxu0
  %v1095 = vadd.f32 %v1076, %v1094
  %v1096 = vpop.f32.mrf.mxu0
  %v1097 = vadd.f32 %v1078, %v1096
  %1098 = vdwg.mxu0
  %v1099 = vsel %vm717, %v1090, 0.0
  %v1100 = vsel %vm717, %v1092, 0.0
  %v1101 = vadd.f32 %v1099, %v1100
  %v1102 = vsel %vm717, %v1095, 0.0
  %v1103 = vadd.f32 %v1101, %v1102
  %v1104 = vsel %vm717, %v1097, 0.0
  %v1105 = vadd.f32 %v1103, %v1104
  %v1106 = vrot.slane %v1105, 4
  %v1107 = vadd.f32 %v1105, %v1106
  %v1108 = vrot.slane %v1107, 2
  %v1109 = vadd.f32 %v1107, %v1108
  %v1110 = vrot.slane %v1109, 1
  %v1111 = vadd.f32 %v1109, %v1110
  %vm1112 = vcmask 516096
  %1113 = vst.msk [vmem:[%s4] sm:$0x1] %vm1112, %v1111
  %v1114 = vmul.f32 %v1090, %v1090
  %v1115 = vmul.f32 %v1092, %v1092
  %v1116 = vmul.f32 %v1095, %v1095
  %v1117 = vmul.f32 %v1097, %v1097
  %v1118 = vsel %vm717, %v1114, 0.0
  %v1119 = vsel %vm717, %v1115, 0.0
  %v1120 = vadd.f32 %v1118, %v1119
  %v1121 = vsel %vm717, %v1116, 0.0
  %v1122 = vadd.f32 %v1120, %v1121
  %v1123 = vsel %vm717, %v1117, 0.0
  %v1124 = vadd.f32 %v1122, %v1123
  %v1125 = vrot.slane %v1124, 4
  %v1126 = vadd.f32 %v1124, %v1125
  %v1127 = vrot.slane %v1126, 2
  %v1128 = vadd.f32 %v1126, %v1127
  %v1129 = vrot.slane %v1128, 1
  %v1130 = vadd.f32 %v1128, %v1129
  %1131 = vst.msk [vmem:[%s5] sm:$0x1] %vm1112, %v1130
  %v1132 = vpack.c.bf16 %v1090, %v1090
  %v1133 = vpack.c.bf16 %v1092, %v1092
  %v1134 = vpack.c.bf16 %v1095, %v1095
  %v1135 = vpack.c.bf16 %v1097, %v1097
  %v1140 = vrot.slane %v1132, 2
  %v1141 = vrot.slane %v1133, 2
  %v1142 = vrot.slane %v1134, 2
  %v1143 = vrot.slane %v1135, 2
  %v1146 = vsel %vm831, %v1132, %v1140
  %vm1147 = vcmask 1043458
  %v1148 = vsel %vm1147, %v1132, %v1140
  %v1150 = vrot.slane %v1148, 2
  %v1153 = vsel %vm831, %v1133, %v1141
  %v1154 = vsel %vm1147, %v1133, %v1141
  %v1156 = vrot.slane %v1154, 2
  %v1159 = vsel %vm831, %v1134, %v1142
  %v1160 = vsel %vm1147, %v1134, %v1142
  %v1162 = vrot.slane %v1160, 2
  %v1165 = vsel %vm831, %v1135, %v1143
  %v1166 = vsel %vm1147, %v1135, %v1143
  %v1168 = vrot.slane %v1166, 2
  %1169 = vst [vmem:[#allocation1] ss:$4 sm:$0xff] %v1146
  %v1170 = vld.sshfl [vmem:[#allocation1] sm:$0xff pattern:$0x73625140]
  %s1173 = scalar_lea.vmem [#allocation1], 32
  %1174 = vst [vmem:[%s1173] ss:$4 sm:$0xff] %v1150
  %v1175 = vld.sshfl [vmem:[#allocation1 + $0x20] sm:$0xff pattern:$0x73625140]
  %1177 = vst [vmem:[#allocation1] ss:$4 sm:$0xff] %v1153
  %v1178 = vld.sshfl [vmem:[#allocation1] sm:$0xff pattern:$0x73625140]
  %1181 = vst [vmem:[%s1173] ss:$4 sm:$0xff] %v1156
  %v1182 = vld.sshfl [vmem:[#allocation1 + $0x20] sm:$0xff pattern:$0x73625140]
  %1184 = vst [vmem:[#allocation1] ss:$4 sm:$0xff] %v1159
  %v1185 = vld.sshfl [vmem:[#allocation1] sm:$0xff pattern:$0x73625140]
  %1188 = vst [vmem:[%s1173] ss:$4 sm:$0xff] %v1162
  %v1189 = vld.sshfl [vmem:[#allocation1 + $0x20] sm:$0xff pattern:$0x73625140]
  %1191 = vst [vmem:[#allocation1] ss:$4 sm:$0xff] %v1165
  %v1192 = vld.sshfl [vmem:[#allocation1] sm:$0xff pattern:$0x73625140]
  %1195 = vst [vmem:[%s1173] ss:$4 sm:$0xff] %v1168
  %v1196 = vld.sshfl [vmem:[#allocation1 + $0x20] sm:$0xff pattern:$0x73625140]
  %v1198 = vunpack.c.l.b16 %v1170
  %v1199 = vunpack.c.l.b16 %v1175
  %v1200 = vunpack.c.l.b16 %v1178
  %v1201 = vunpack.c.l.b16 %v1182
  %v1202 = vunpack.c.l.b16 %v1185
  %v1203 = vunpack.c.l.b16 %v1189
  %v1204 = vunpack.c.l.b16 %v1192
  %v1205 = vunpack.c.l.b16 %v1196
  %v1206 = vrot.slane %v1199, 7
  %vm1207 = vcmask 1041409
  %v1208 = vsel %vm1207, %v1206, %v1198
  %v1209 = vrot.slane %v1200, 6
  %vm1210 = vcmask 1042434
  %v1211 = vsel %vm1210, %v1209, %v1208
  %v1212 = vrot.slane %v1201, 5
  %vm1213 = vcmask 1043459
  %v1214 = vsel %vm1213, %v1212, %v1211
  %v1215 = vrot.slane %v1202, 4
  %vm1216 = vcmask 1044484
  %v1217 = vsel %vm1216, %v1215, %v1214
  %v1218 = vrot.slane %v1203, 3
  %vm1219 = vcmask 1045509
  %v1220 = vsel %vm1219, %v1218, %v1217
  %v1221 = vrot.slane %v1204, 2
  %vm1222 = vcmask 1046534
  %v1223 = vsel %vm1222, %v1221, %v1220
  %v1224 = vrot.slane %v1205, 1
  %vm1225 = vcmask 1047559
  %v1226 = vsel %vm1225, %v1224, %v1223
  %v1227 = vpack.c.b16 %v1226, %v1226
  %1228 = vst [vmem:[#allocation1] ss:$4 sm:$0xff] %v1146
  %v1229 = vld.sshfl [vmem:[#allocation1] sm:$0xff pattern:$0x73625140]
  %s1231 = scalar_lea.vmem [#allocation1], 32
  %1232 = vst [vmem:[%s1231] ss:$4 sm:$0xff] %v1150
  %v1233 = vld.sshfl [vmem:[#allocation1 + $0x20] sm:$0xff pattern:$0x73625140]
  %1235 = vst [vmem:[#allocation1] ss:$4 sm:$0xff] %v1153
  %v1236 = vld.sshfl [vmem:[#allocation1] sm:$0xff pattern:$0x73625140]
  %1238 = vst [vmem:[%s1231] ss:$4 sm:$0xff] %v1156
  %v1239 = vld.sshfl [vmem:[#allocation1 + $0x20] sm:$0xff pattern:$0x73625140]
  %1241 = vst [vmem:[#allocation1] ss:$4 sm:$0xff] %v1159
  %v1242 = vld.sshfl [vmem:[#allocation1] sm:$0xff pattern:$0x73625140]
  %1244 = vst [vmem:[%s1231] ss:$4 sm:$0xff] %v1162
  %v1245 = vld.sshfl [vmem:[#allocation1 + $0x20] sm:$0xff pattern:$0x73625140]
  %1247 = vst [vmem:[#allocation1] ss:$4 sm:$0xff] %v1165
  %v1248 = vld.sshfl [vmem:[#allocation1] sm:$0xff pattern:$0x73625140]
  %1250 = vst [vmem:[%s1231] ss:$4 sm:$0xff] %v1168
  %v1251 = vld.sshfl [vmem:[#allocation1 + $0x20] sm:$0xff pattern:$0x73625140]
  %v1253 = vunpack.c.l.b16 %v1229
  %v1254 = vunpack.c.l.b16 %v1233
  %v1255 = vunpack.c.l.b16 %v1236
  %v1256 = vunpack.c.l.b16 %v1239
  %v1257 = vunpack.c.l.b16 %v1242
  %v1258 = vunpack.c.l.b16 %v1245
  %v1259 = vunpack.c.l.b16 %v1248
  %v1260 = vunpack.c.l.b16 %v1251
  %v1261 = vrot.slane %v1253, 1
  %v1262 = vsel %vm1207, %v1254, %v1261
  %v1263 = vrot.slane %v1255, 7
  %v1264 = vsel %vm1210, %v1263, %v1262
  %v1265 = vrot.slane %v1256, 6
  %v1266 = vsel %vm1213, %v1265, %v1264
  %v1267 = vrot.slane %v1257, 5
  %v1268 = vsel %vm1216, %v1267, %v1266
  %v1269 = vrot.slane %v1258, 4
  %v1270 = vsel %vm1219, %v1269, %v1268
  %v1271 = vrot.slane %v1259, 3
  %v1272 = vsel %vm1222, %v1271, %v1270
  %v1273 = vrot.slane %v1260, 2
  %v1274 = vsel %vm1225, %v1273, %v1272
  %v1275 = vpack.c.b16 %v1274, %v1274
  %1276 = vrot.lane.b32.xlu0 %v1275, 32
  %v1277 = vpop.permute.xlu0 %1276
  %1278 = vst [vmem:[#allocation1] ss:$4 sm:$0xff] %v1146
  %v1279 = vld.sshfl [vmem:[#allocation1] sm:$0xff pattern:$0x73625140]
  %s1281 = scalar_lea.vmem [#allocation1], 32
  %1282 = vst [vmem:[%s1281] ss:$4 sm:$0xff] %v1150
  %v1283 = vld.sshfl [vmem:[#allocation1 + $0x20] sm:$0xff pattern:$0x73625140]
  %1285 = vst [vmem:[#allocation1] ss:$4 sm:$0xff] %v1153
  %v1286 = vld.sshfl [vmem:[#allocation1] sm:$0xff pattern:$0x73625140]
  %1288 = vst [vmem:[%s1281] ss:$4 sm:$0xff] %v1156
  %v1289 = vld.sshfl [vmem:[#allocation1 + $0x20] sm:$0xff pattern:$0x73625140]
  %1291 = vst [vmem:[#allocation1] ss:$4 sm:$0xff] %v1159
  %v1292 = vld.sshfl [vmem:[#allocation1] sm:$0xff pattern:$0x73625140]
  %1294 = vst [vmem:[%s1281] ss:$4 sm:$0xff] %v1162
  %v1295 = vld.sshfl [vmem:[#allocation1 + $0x20] sm:$0xff pattern:$0x73625140]
  %1297 = vst [vmem:[#allocation1] ss:$4 sm:$0xff] %v1165
  %v1298 = vld.sshfl [vmem:[#allocation1] sm:$0xff pattern:$0x73625140]
  %1300 = vst [vmem:[%s1281] ss:$4 sm:$0xff] %v1168
  %v1301 = vld.sshfl [vmem:[#allocation1 + $0x20] sm:$0xff pattern:$0x73625140]
  %v1303 = vunpack.c.l.b16 %v1279
  %v1304 = vunpack.c.l.b16 %v1283
  %v1305 = vunpack.c.l.b16 %v1286
  %v1306 = vunpack.c.l.b16 %v1289
  %v1307 = vunpack.c.l.b16 %v1292
  %v1308 = vunpack.c.l.b16 %v1295
  %v1309 = vunpack.c.l.b16 %v1298
  %v1310 = vunpack.c.l.b16 %v1301
  %v1311 = vrot.slane %v1303, 2
  %v1312 = vrot.slane %v1304, 1
  %v1313 = vsel %vm1207, %v1312, %v1311
  %v1314 = vsel %vm1210, %v1305, %v1313
  %v1315 = vrot.slane %v1306, 7
  %v1316 = vsel %vm1213, %v1315, %v1314
  %v1317 = vrot.slane %v1307, 6
  %v1318 = vsel %vm1216, %v1317, %v1316
  %v1319 = vrot.slane %v1308, 5
  %v1320 = vsel %vm1219, %v1319, %v1318
  %v1321 = vrot.slane %v1309, 4
  %v1322 = vsel %vm1222, %v1321, %v1320
  %v1323 = vrot.slane %v1310, 3
  %v1324 = vsel %vm1225, %v1323, %v1322
  %v1325 = vpack.c.b16 %v1324, %v1324
  %1326 = vrot.lane.b32.xlu0 %v1325, 64
  %v1327 = vpop.permute.xlu0 %1326
  %1328 = vst [vmem:[#allocation1] ss:$4 sm:$0xff] %v1146
  %v1329 = vld.sshfl [vmem:[#allocation1] sm:$0xff pattern:$0x73625140]
  %s1331 = scalar_lea.vmem [#allocation1], 32
  %1332 = vst [vmem:[%s1331] ss:$4 sm:$0xff] %v1150
  %v1333 = vld.sshfl [vmem:[#allocation1 + $0x20] sm:$0xff pattern:$0x73625140]
  %1335 = vst [vmem:[#allocation1] ss:$4 sm:$0xff] %v1153
  %v1336 = vld.sshfl [vmem:[#allocation1] sm:$0xff pattern:$0x73625140]
  %1338 = vst [vmem:[%s1331] ss:$4 sm:$0xff] %v1156
  %v1339 = vld.sshfl [vmem:[#allocation1 + $0x20] sm:$0xff pattern:$0x73625140]
  %1341 = vst [vmem:[#allocation1] ss:$4 sm:$0xff] %v1159
  %v1342 = vld.sshfl [vmem:[#allocation1] sm:$0xff pattern:$0x73625140]
  %1344 = vst [vmem:[%s1331] ss:$4 sm:$0xff] %v1162
  %v1345 = vld.sshfl [vmem:[#allocation1 + $0x20] sm:$0xff pattern:$0x73625140]
  %1347 = vst [vmem:[#allocation1] ss:$4 sm:$0xff] %v1165
  %v1348 = vld.sshfl [vmem:[#allocation1] sm:$0xff pattern:$0x73625140]
  %1350 = vst [vmem:[%s1331] ss:$4 sm:$0xff] %v1168
  %v1351 = vld.sshfl [vmem:[#allocation1 + $0x20] sm:$0xff pattern:$0x73625140]
  %v1353 = vunpack.c.l.b16 %v1329
  %v1354 = vunpack.c.l.b16 %v1333
  %v1355 = vunpack.c.l.b16 %v1336
  %v1356 = vunpack.c.l.b16 %v1339
  %v1357 = vunpack.c.l.b16 %v1342
  %v1358 = vunpack.c.l.b16 %v1345
  %v1359 = vunpack.c.l.b16 %v1348
  %v1360 = vunpack.c.l.b16 %v1351
  %v1361 = vrot.slane %v1353, 3
  %v1362 = vrot.slane %v1354, 2
  %v1363 = vsel %vm1207, %v1362, %v1361
  %v1364 = vrot.slane %v1355, 1
  %v1365 = vsel %vm1210, %v1364, %v1363
  %v1366 = vsel %vm1213, %v1356, %v1365
  %v1367 = vrot.slane %v1357, 7
  %v1368 = vsel %vm1216, %v1367, %v1366
  %v1369 = vrot.slane %v1358, 6
  %v1370 = vsel %vm1219, %v1369, %v1368
  %v1371 = vrot.slane %v1359, 5
  %v1372 = vsel %vm1222, %v1371, %v1370
  %v1373 = vrot.slane %v1360, 4
  %v1374 = vsel %vm1225, %v1373, %v1372
  %v1375 = vpack.c.b16 %v1374, %v1374
  %1376 = vrot.lane.b32.xlu0 %v1375, 96
  %v1377 = vpop.permute.xlu0 %1376
  %v1380 = vsel %vm692, %v1227, %v1277
  %v1382 = vsel %vm717, %v1380, %v1327
  %v1384 = vsel %vm734, %v1382, %v1377
  %1386 = vst [vmem:[%s3] sm:$0xf] %v1384
  %1387 = vst [vmem:[#allocation1] ss:$4 sm:$0xff] %v1146
  %v1388 = vld.sshfl [vmem:[#allocation1] sm:$0xff pattern:$0x73625140]
  %s1390 = scalar_lea.vmem [#allocation1], 32
  %1391 = vst [vmem:[%s1390] ss:$4 sm:$0xff] %v1150
  %v1392 = vld.sshfl [vmem:[#allocation1 + $0x20] sm:$0xff pattern:$0x73625140]
  %1394 = vst [vmem:[#allocation1] ss:$4 sm:$0xff] %v1153
  %v1395 = vld.sshfl [vmem:[#allocation1] sm:$0xff pattern:$0x73625140]
  %1397 = vst [vmem:[%s1390] ss:$4 sm:$0xff] %v1156
  %v1398 = vld.sshfl [vmem:[#allocation1 + $0x20] sm:$0xff pattern:$0x73625140]
  %1400 = vst [vmem:[#allocation1] ss:$4 sm:$0xff] %v1159
  %v1401 = vld.sshfl [vmem:[#allocation1] sm:$0xff pattern:$0x73625140]
  %1403 = vst [vmem:[%s1390] ss:$4 sm:$0xff] %v1162
  %v1404 = vld.sshfl [vmem:[#allocation1 + $0x20] sm:$0xff pattern:$0x73625140]
  %1406 = vst [vmem:[#allocation1] ss:$4 sm:$0xff] %v1165
  %v1407 = vld.sshfl [vmem:[#allocation1] sm:$0xff pattern:$0x73625140]
  %1409 = vst [vmem:[%s1390] ss:$4 sm:$0xff] %v1168
  %v1410 = vld.sshfl [vmem:[#allocation1 + $0x20] sm:$0xff pattern:$0x73625140]
  %v1412 = vunpack.c.l.b16 %v1388
  %v1413 = vunpack.c.l.b16 %v1392
  %v1414 = vunpack.c.l.b16 %v1395
  %v1415 = vunpack.c.l.b16 %v1398
  %v1416 = vunpack.c.l.b16 %v1401
  %v1417 = vunpack.c.l.b16 %v1404
  %v1418 = vunpack.c.l.b16 %v1407
  %v1419 = vunpack.c.l.b16 %v1410
  %v1420 = vrot.slane %v1413, 7
  %v1421 = vsel %vm1207, %v1420, %v1412
  %v1422 = vrot.slane %v1414, 6
  %v1423 = vsel %vm1210, %v1422, %v1421
  %v1424 = vrot.slane %v1415, 5
  %v1425 = vsel %vm1213, %v1424, %v1423
  %v1426 = vrot.slane %v1416, 4
  %v1427 = vsel %vm1216, %v1426, %v1425
  %v1428 = vrot.slane %v1417, 3
  %v1429 = vsel %vm1219, %v1428, %v1427
  %v1430 = vrot.slane %v1418, 2
  %v1431 = vsel %vm1222, %v1430, %v1429
  %v1432 = vrot.slane %v1419, 1
  %v1433 = vsel %vm1225, %v1432, %v1431
  %v1434 = vpack.c.b16 %v1433, %v1433
  %1435 = vrot.lane.b32.xlu0 %v1434, 96
  %v1436 = vpop.permute.xlu0 %1435
  %1437 = vst [vmem:[#allocation1] ss:$4 sm:$0xff] %v1146
  %v1438 = vld.sshfl [vmem:[#allocation1] sm:$0xff pattern:$0x73625140]
  %s1440 = scalar_lea.vmem [#allocation1], 32
  %1441 = vst [vmem:[%s1440] ss:$4 sm:$0xff] %v1150
  %v1442 = vld.sshfl [vmem:[#allocation1 + $0x20] sm:$0xff pattern:$0x73625140]
  %1444 = vst [vmem:[#allocation1] ss:$4 sm:$0xff] %v1153
  %v1445 = vld.sshfl [vmem:[#allocation1] sm:$0xff pattern:$0x73625140]
  %1447 = vst [vmem:[%s1440] ss:$4 sm:$0xff] %v1156
  %v1448 = vld.sshfl [vmem:[#allocation1 + $0x20] sm:$0xff pattern:$0x73625140]
  %1450 = vst [vmem:[#allocation1] ss:$4 sm:$0xff] %v1159
  %v1451 = vld.sshfl [vmem:[#allocation1] sm:$0xff pattern:$0x73625140]
  %1453 = vst [vmem:[%s1440] ss:$4 sm:$0xff] %v1162
  %v1454 = vld.sshfl [vmem:[#allocation1 + $0x20] sm:$0xff pattern:$0x73625140]
  %1456 = vst [vmem:[#allocation1] ss:$4 sm:$0xff] %v1165
  %v1457 = vld.sshfl [vmem:[#allocation1] sm:$0xff pattern:$0x73625140]
  %1459 = vst [vmem:[%s1440] ss:$4 sm:$0xff] %v1168
  %v1460 = vld.sshfl [vmem:[#allocation1 + $0x20] sm:$0xff pattern:$0x73625140]
  %v1462 = vunpack.c.l.b16 %v1438
  %v1463 = vunpack.c.l.b16 %v1442
  %v1464 = vunpack.c.l.b16 %v1445
  %v1465 = vunpack.c.l.b16 %v1448
  %v1466 = vunpack.c.l.b16 %v1451
  %v1467 = vunpack.c.l.b16 %v1454
  %v1468 = vunpack.c.l.b16 %v1457
  %v1469 = vunpack.c.l.b16 %v1460
  %v1470 = vrot.slane %v1462, 1
  %v1471 = vsel %vm1207, %v1463, %v1470
  %v1472 = vrot.slane %v1464, 7
  %v1473 = vsel %vm1210, %v1472, %v1471
  %v1474 = vrot.slane %v1465, 6
  %v1475 = vsel %vm1213, %v1474, %v1473
  %v1476 = vrot.slane %v1466, 5
  %v1477 = vsel %vm1216, %v1476, %v1475
  %v1478 = vrot.slane %v1467, 4
  %v1479 = vsel %vm1219, %v1478, %v1477
  %v1480 = vrot.slane %v1468, 3
  %v1481 = vsel %vm1222, %v1480, %v1479
  %v1482 = vrot.slane %v1469, 2
  %v1483 = vsel %vm1225, %v1482, %v1481
  %v1484 = vpack.c.b16 %v1483, %v1483
  %1485 = vst [vmem:[#allocation1] ss:$4 sm:$0xff] %v1146
  %v1486 = vld.sshfl [vmem:[#allocation1] sm:$0xff pattern:$0x73625140]
  %s1488 = scalar_lea.vmem [#allocation1], 32
  %1489 = vst [vmem:[%s1488] ss:$4 sm:$0xff] %v1150
  %v1490 = vld.sshfl [vmem:[#allocation1 + $0x20] sm:$0xff pattern:$0x73625140]
  %1492 = vst [vmem:[#allocation1] ss:$4 sm:$0xff] %v1153
  %v1493 = vld.sshfl [vmem:[#allocation1] sm:$0xff pattern:$0x73625140]
  %1495 = vst [vmem:[%s1488] ss:$4 sm:$0xff] %v1156
  %v1496 = vld.sshfl [vmem:[#allocation1 + $0x20] sm:$0xff pattern:$0x73625140]
  %1498 = vst [vmem:[#allocation1] ss:$4 sm:$0xff] %v1159
  %v1499 = vld.sshfl [vmem:[#allocation1] sm:$0xff pattern:$0x73625140]
  %1501 = vst [vmem:[%s1488] ss:$4 sm:$0xff] %v1162
  %v1502 = vld.sshfl [vmem:[#allocation1 + $0x20] sm:$0xff pattern:$0x73625140]
  %1504 = vst [vmem:[#allocation1] ss:$4 sm:$0xff] %v1165
  %v1505 = vld.sshfl [vmem:[#allocation1] sm:$0xff pattern:$0x73625140]
  %1507 = vst [vmem:[%s1488] ss:$4 sm:$0xff] %v1168
  %v1508 = vld.sshfl [vmem:[#allocation1 + $0x20] sm:$0xff pattern:$0x73625140]
  %v1510 = vunpack.c.l.b16 %v1486
  %v1511 = vunpack.c.l.b16 %v1490
  %v1512 = vunpack.c.l.b16 %v1493
  %v1513 = vunpack.c.l.b16 %v1496
  %v1514 = vunpack.c.l.b16 %v1499
  %v1515 = vunpack.c.l.b16 %v1502
  %v1516 = vunpack.c.l.b16 %v1505
  %v1517 = vunpack.c.l.b16 %v1508
  %v1518 = vrot.slane %v1510, 2
  %v1519 = vrot.slane %v1511, 1
  %v1520 = vsel %vm1207, %v1519, %v1518
  %v1521 = vsel %vm1210, %v1512, %v1520
  %v1522 = vrot.slane %v1513, 7
  %v1523 = vsel %vm1213, %v1522, %v1521
  %v1524 = vrot.slane %v1514, 6
  %v1525 = vsel %vm1216, %v1524, %v1523
  %v1526 = vrot.slane %v1515, 5
  %v1527 = vsel %vm1219, %v1526, %v1525
  %v1528 = vrot.slane %v1516, 4
  %v1529 = vsel %vm1222, %v1528, %v1527
  %v1530 = vrot.slane %v1517, 3
  %v1531 = vsel %vm1225, %v1530, %v1529
  %v1532 = vpack.c.b16 %v1531, %v1531
  %1533 = vrot.lane.b32.xlu0 %v1532, 32
  %v1534 = vpop.permute.xlu0 %1533
  %1535 = vst [vmem:[#allocation1] ss:$4 sm:$0xff] %v1146
  %v1536 = vld.sshfl [vmem:[#allocation1] sm:$0xff pattern:$0x73625140]
  %s1538 = scalar_lea.vmem [#allocation1], 32
  %1539 = vst [vmem:[%s1538] ss:$4 sm:$0xff] %v1150
  %v1540 = vld.sshfl [vmem:[#allocation1 + $0x20] sm:$0xff pattern:$0x73625140]
  %1542 = vst [vmem:[#allocation1] ss:$4 sm:$0xff] %v1153
  %v1543 = vld.sshfl [vmem:[#allocation1] sm:$0xff pattern:$0x73625140]
  %1545 = vst [vmem:[%s1538] ss:$4 sm:$0xff] %v1156
  %v1546 = vld.sshfl [vmem:[#allocation1 + $0x20] sm:$0xff pattern:$0x73625140]
  %1548 = vst [vmem:[#allocation1] ss:$4 sm:$0xff] %v1159
  %v1549 = vld.sshfl [vmem:[#allocation1] sm:$0xff pattern:$0x73625140]
  %1551 = vst [vmem:[%s1538] ss:$4 sm:$0xff] %v1162
  %v1552 = vld.sshfl [vmem:[#allocation1 + $0x20] sm:$0xff pattern:$0x73625140]
  %1554 = vst [vmem:[#allocation1] ss:$4 sm:$0xff] %v1165
  %v1555 = vld.sshfl [vmem:[#allocation1] sm:$0xff pattern:$0x73625140]
  %1557 = vst [vmem:[%s1538] ss:$4 sm:$0xff] %v1168
  %v1558 = vld.sshfl [vmem:[#allocation1 + $0x20] sm:$0xff pattern:$0x73625140]
  %v1560 = vunpack.c.l.b16 %v1536
  %v1561 = vunpack.c.l.b16 %v1540
  %v1562 = vunpack.c.l.b16 %v1543
  %v1563 = vunpack.c.l.b16 %v1546
  %v1564 = vunpack.c.l.b16 %v1549
  %v1565 = vunpack.c.l.b16 %v1552
  %v1566 = vunpack.c.l.b16 %v1555
  %v1567 = vunpack.c.l.b16 %v1558
  %v1568 = vrot.slane %v1560, 3
  %v1569 = vrot.slane %v1561, 2
  %v1570 = vsel %vm1207, %v1569, %v1568
  %v1571 = vrot.slane %v1562, 1
  %v1572 = vsel %vm1210, %v1571, %v1570
  %v1573 = vsel %vm1213, %v1563, %v1572
  %v1574 = vrot.slane %v1564, 7
  %v1575 = vsel %vm1216, %v1574, %v1573
  %v1576 = vrot.slane %v1565, 6
  %v1577 = vsel %vm1219, %v1576, %v1575
  %v1578 = vrot.slane %v1566, 5
  %v1579 = vsel %vm1222, %v1578, %v1577
  %v1580 = vrot.slane %v1567, 4
  %v1581 = vsel %vm1225, %v1580, %v1579
  %v1582 = vpack.c.b16 %v1581, %v1581
  %1583 = vrot.lane.b32.xlu0 %v1582, 64
  %v1584 = vpop.permute.xlu0 %1583
  %v1587 = vsel %vm692, %v1436, %v1484
  %v1589 = vsel %vm717, %v1587, %v1534
  %v1591 = vsel %vm734, %v1589, %v1584
  %1593 = vst [vmem:[%s3 + $0x4] sm:$0xf] %v1591
  // Predicated region
  $region14: #{reconstruct_forward.2} parent=0 // pred_check
    _
  $region15: #{reconstruct_forward.2} parent=0 // pred_check_branch
    %1595 = sbr.rel (0) target = $region17
  $region16: #{reconstruct_forward.2} parent=0 // pred_region
    _
  $region17: #{reconstruct_forward.2} parent=0 // pred_fallthru
    _
  // Predicated region
  $region18: #{reconstruct_forward.2} parent=0 // pred_check
    _
  $region19: #{reconstruct_forward.2} parent=0 // pred_check_branch
    %1597 = sbr.rel (0) target = $region21
  $region20: #{reconstruct_forward.2} parent=0 // pred_region
    _
  $region21: #{reconstruct_forward.2} parent=0 // pred_fallthru
    _
  // Predicated region
  $region22: #{reconstruct_forward.2} parent=0 // pred_check
    _
  $region23: #{reconstruct_forward.2} parent=0 // pred_check_branch
    %1599 = sbr.rel (0) target = $region25
  $region24: #{reconstruct_forward.2} parent=0 // pred_region
    _
  $region25: #{reconstruct_forward.2} parent=0 // pred_fallthru
    _
  // Predicated region
  $region26: #{reconstruct_forward.2} parent=0 // pred_check
    _
  $region27: #{reconstruct_forward.2} parent=0 // pred_check_branch
    %1601 = sbr.rel (0) target = $region29
  $region28: #{reconstruct_forward.2} parent=0 // pred_region
    _
  $region29: #{reconstruct_forward.2} parent=0 // pred_fallthru
    _
  // Predicated region
  $region30: #{reconstruct_forward.2} parent=0 // pred_check
    _
  $region31: #{reconstruct_forward.2} parent=0 // pred_check_branch
    %1603 = sbr.rel (0) target = $region33
  $region32: #{reconstruct_forward.2} parent=0 // pred_region
    _
  $region33: #{reconstruct_forward.2} parent=0 // pred_fallthru
    _
  // Predicated region
  $region34: #{reconstruct_forward.2} parent=0 // pred_check
    _
  $region35: #{reconstruct_forward.2} parent=0 // pred_check_branch
    %1605 = sbr.rel (0) target = $region37
  $region36: #{reconstruct_forward.2} parent=0 // pred_region
    _
  $region37: #{reconstruct_forward.2} parent=0 // pred_fallthru
    _

</llo_original>
